<compile_context>
chip_gen: v7x
topology: tpu7x:2x2x1
jax: 0.10.0
libtpu: 0.0.40
codegen_flags: <defaults>
</compile_context>

<pallas_src>
import functools

import jax
import jax.numpy as jnp
from jax import lax
from jax.experimental import pallas as pl
from jax.experimental.pallas import tpu as pltpu


def _round_up(x, m):
    return ((x + m - 1) // m) * m


def _fused_embedding_kernel(ids_ref, table_ref, out_ref, *, block_sizes):
    """ids_ref  : (tile, n) int32 raw per-vocab token ids.
    table_ref: (k_pad, e_pad) block-diagonal fused table (bf16); vocab block j
               occupies rows [sum(block_sizes[:j]), +block_sizes[j]).
    out_ref  : (tile, e_pad) — single lane-dense full-tile store."""
    hot_blocks = []
    for j, v_pad in enumerate(block_sizes):
        iota = lax.broadcasted_iota(jnp.int32, (1, v_pad), 1)
        # bool compare on the VPU, one cast per 128-lane-aligned block.
        hot_blocks.append((ids_ref[:, j:j + 1] == iota).astype(table_ref.dtype))
    multi_hot = hot_blocks[0] if len(hot_blocks) == 1 else jnp.concatenate(
        hot_blocks, axis=-1)
    out_ref[...] = jnp.dot(
        multi_hot, table_ref[...], preferred_element_type=jnp.float32
    ).astype(out_ref.dtype)


def multi_embedding(x, tables, *, tile=1024, out_dtype=jnp.float32,
                    table_dtype=jnp.bfloat16):
    """x: [total_seq_len, num_vocab] int. tables: list of [V_i, E_i] float arrays,
    one per *kept* (nonzero-embedding-size) vocabulary, in layer order."""
    total_seq = int(x.shape[0])
    n = len(tables)
    vocab_sizes = [int(t.shape[0]) for t in tables]
    emb_sizes = [int(t.shape[1]) for t in tables]
    total_e = sum(emb_sizes)

    # Per-vocab K blocks padded to 128 rows (lane-aligned for the in-kernel concat);
    # output lanes padded to a 128 multiple for an unmasked full-tile store.
    block_sizes = tuple(_round_up(v, 128) for v in vocab_sizes)
    k_pad = sum(block_sizes)
    e_pad = _round_up(total_e, 128)

    # Block-diagonal fused table in bf16 (halves resident VMEM and feeds the MXU's
    # native bf16 path; the one-hot matmul with f32 accumulation is still exact).
    fused = jnp.zeros((k_pad, e_pad), table_dtype)
    r = c = 0
    for t, v_pad in zip(tables, block_sizes):
        v, e = int(t.shape[0]), int(t.shape[1])
        fused = fused.at[r:r + v, c:c + e].set(t.astype(table_dtype))
        r += v_pad
        c += e

    # Column i of x feeds the i-th kept layer (matches enumerate(self.layers)).
    ids = x[:, :n].astype(jnp.int32)

    # Generation-aware VMEM budget: ~80% of physical VMEM (v5e/v6e 128 MiB -> ~102 MiB,
    # v7x 64 MiB -> ~51 MiB); conservative fallback if the query is unavailable.
    try:
        vmem_cap = int(pltpu.get_tpu_info().vmem_capacity_bytes)
    except Exception:
        vmem_cap = 64 * 1024 * 1024
    budget = int(vmem_cap * 0.8)

    tbl_bytes = jnp.dtype(table_dtype).itemsize
    out_bytes = jnp.dtype(out_dtype).itemsize
    table_bytes = k_pad * e_pad * tbl_bytes
    # Per-row VMEM: double-buffered ids + double-buffered out + one-hot temps
    # (bool mask + bf16 MXU operand).
    per_row = 2 * n * 4 + 2 * e_pad * out_bytes + k_pad * (1 + tbl_bytes)
    max_tile_by_vmem = max(8, ((budget - 2 * table_bytes) // max(per_row, 1)) // 8 * 8)
    # TODO(synk): if the fused table alone exceeds the budget, add a K grid axis with
    # a VMEM accumulator (pl.when init/finalize) instead of full table residency.

    # Big row tiles (the grid is a sequential loop, ~0.35 us/step), clamped by the
    # VMEM budget and the 8-padded sequence; rows padded so any length works.
    tile = max(8, min(int(tile), max_tile_by_vmem, _round_up(total_seq, 8)))
    padded_seq = _round_up(total_seq, tile)
    # v7x has 2 TensorCores: for large inputs keep >= 2 "parallel" grid steps so rows
    # can shard across both cores (no-op on 1-TC v5e/v6e).
    if padded_seq // tile < 2 and total_seq >= 1024:
        tile = _round_up(-(-total_seq // 2), 8)
        padded_seq = _round_up(total_seq, tile)
    if padded_seq != total_seq:
        ids = jnp.pad(ids, ((0, padded_seq - total_seq), (0, 0)))

    grid = (padded_seq // tile,)
    kernel = functools.partial(_fused_embedding_kernel, block_sizes=block_sizes)

    vmem_limit = int(min(budget,
                         max(16 * 1024 * 1024,
                             2 * (2 * table_bytes + tile * per_row))))

    def _call(single_buffer_table):
        if single_buffer_table:
            # Constant index_map: the table block never changes, one buffer suffices.
            table_spec = pl.BlockSpec((k_pad, e_pad), lambda i: (0, 0),
                                      pipeline_mode=pl.Buffered(1))
        else:
            table_spec = pl.BlockSpec((k_pad, e_pad), lambda i: (0, 0))
        return pl.pallas_call(
            kernel,
            out_shape=jax.ShapeDtypeStruct((padded_seq, e_pad), out_dtype),
            grid_spec=pltpu.PrefetchScalarGridSpec(
                num_scalar_prefetch=0,
                grid=grid,
                in_specs=[
                    pl.BlockSpec((tile, n), lambda i: (i, 0)),  # raw ids
                    table_spec,                                 # fused table (resident)
                ],
                out_specs=pl.BlockSpec((tile, e_pad), lambda i: (i, 0)),
            ),
            compiler_params=pltpu.CompilerParams(
                dimension_semantics=("parallel",),
                vmem_limit_bytes=vmem_limit,
            ),
        )(ids, fused)

    try:
        out = _call(True)
    except Exception:
        # Fallback for jax/Mosaic versions without BlockSpec pipeline_mode support.
        out = _call(False)

    # Strip row / lane padding (wrapper-side layout plumbing, free).
    return out[:total_seq, :total_e]


if __name__ == "__main__":
    key = jax.random.PRNGKey(0)

    # MultiEmbedding config: "seg" has embedding_size 0, so layers are created only
    # for "tok" and "pos" (kept vocabularies).
    vocab_sizes = {"tok": 32, "pos": 16, "seg": 8}
    embedding_sizes = {"tok": 16, "pos": 8, "seg": 0}
    kept = [(v, embedding_sizes[k]) for k, v in vocab_sizes.items()
            if embedding_sizes[k] != 0]

    # Deterministic parameter init (nn.Embedding default ~ N(0,1)).
    tkeys = jax.random.split(key, len(kept) + 1)
    tables = [
        jax.random.normal(tkeys[i], (v, e), dtype=jnp.float32)
        for i, (v, e) in enumerate(kept)
    ]

    # Input indices [total_seq_len, num_vocab]; column i feeds the i-th kept layer
    # (matches enumerate(self.layers)); trailing columns for zero-size vocabs exist
    # but are unused. Sequence length deliberately NOT a multiple of the tile.
    total_seq_len = 300
    num_vocab = len(vocab_sizes)
    xkeys = jax.random.split(tkeys[-1], num_vocab)
    all_sizes = list(vocab_sizes.values())
    cols = []
    for i in range(num_vocab):
        mv = kept[i][0] if i < len(kept) else all_sizes[i]
        cols.append(
            jax.random.randint(xkeys[i], (total_seq_len, 1), 0, mv, dtype=jnp.int32)
        )
    x = jnp.concatenate(cols, axis=-1)

    out = multi_embedding(x, tables)
    out = jax.block_until_ready(out)

    # Reference 1: per-vocab gather + concat with the bf16-rounded tables the kernel
    # holds (the one-hot matmul with f32 accumulation is exact at that precision).
    ref_tables = [t.astype(jnp.bfloat16).astype(jnp.float32) for t in tables]
    ref = jnp.concatenate(
        [ref_tables[i][x[:, i]] for i in range(len(tables))], axis=-1
    )
    # Reference 2: full-f32 weights (PyTorch numerics); bf16 table rounding only.
    ref_f32 = jnp.concatenate(
        [tables[i][x[:, i]] for i in range(len(tables))], axis=-1
    )

    assert out.shape == (total_seq_len, sum(e for _, e in kept)), out.shape
    assert jnp.allclose(out, ref, atol=1e-6, rtol=1e-6), "mismatch vs bf16 reference"
    assert jnp.allclose(out, ref_f32, atol=3e-2, rtol=3e-2), "mismatch vs f32 reference"
    print("KERNEL_OK")
</pallas_src>

<mosaic_0001>
module attributes {stable_mosaic.version = 11 : i64} {
  func.func @_fused_embedding_kernel(%arg0: i32, %arg1: memref<304x2xi32, #tpu.memory_space<vmem>>, %arg2: memref<256x128xbf16, #tpu.memory_space<vmem>>, %arg3: memref<304x128xf32, #tpu.memory_space<vmem>>) attributes {dimension_semantics = [#tpu.dimension_semantics<parallel>], iteration_bounds = array<i64: 1>, scalar_prefetch = 0 : i64, scratch_operands = 0 : i64, tpu.core_type = #tpu.core_type<tc>, window_params = [{transform_indices = @transform_0, window_bounds = array<i64: 304, 2>}, {pipeline_mode = #tpu.pipeline_mode<synchronous>, transform_indices = @transform_1, window_bounds = array<i64: 256, 128>}, {transform_indices = @transform_2, window_bounds = array<i64: 304, 128>}]} {
    %0 = tpu.iota {dimensions = array<i32: 1>} : vector<1x128xi32>
    %c0 = arith.constant 0 : index
    %c0_0 = arith.constant 0 : index
    %1 = vector.load %arg1[%c0, %c0_0] : memref<304x2xi32, #tpu.memory_space<vmem>>, vector<304x1xi32>
    %2 = vector.broadcast %1 : vector<304x1xi32> to vector<304x128xi32>
    %3 = vector.broadcast %0 : vector<1x128xi32> to vector<304x128xi32>
    %4 = arith.cmpi eq, %2, %3 : vector<304x128xi32>
    %5 = arith.extui %4 : vector<304x128xi1> to vector<304x128xi32>
    %6 = arith.sitofp %5 : vector<304x128xi32> to vector<304x128xf32>
    %7 = arith.truncf %6 : vector<304x128xf32> to vector<304x128xbf16>
    %8 = tpu.iota {dimensions = array<i32: 1>} : vector<1x128xi32>
    %c0_1 = arith.constant 0 : index
    %c1 = arith.constant 1 : index
    %9 = vector.load %arg1[%c0_1, %c1] : memref<304x2xi32, #tpu.memory_space<vmem>>, vector<304x1xi32>
    %10 = vector.broadcast %9 : vector<304x1xi32> to vector<304x128xi32>
    %11 = vector.broadcast %8 : vector<1x128xi32> to vector<304x128xi32>
    %12 = arith.cmpi eq, %10, %11 : vector<304x128xi32>
    %13 = arith.extui %12 : vector<304x128xi1> to vector<304x128xi32>
    %14 = arith.sitofp %13 : vector<304x128xi32> to vector<304x128xf32>
    %15 = arith.truncf %14 : vector<304x128xf32> to vector<304x128xbf16>
    %16 = tpu.concatenate %7, %15 in 1 : vector<304x128xbf16>, vector<304x128xbf16> -> vector<304x256xbf16>
    %c0_2 = arith.constant 0 : index
    %c0_3 = arith.constant 0 : index
    %17 = vector.load %arg2[%c0_2, %c0_3] : memref<256x128xbf16, #tpu.memory_space<vmem>>, vector<256x128xbf16>
    %cst = arith.constant dense<0.000000e+00> : vector<304x128xf32>
    %18 = tpu.matmul %16, %17, %cst {dimension_numbers = #tpu.dot_dimension_numbers<[1], [0], [0], [1], [0, 0, 1, 1], [], []>} : vector<304x256xbf16>, vector<256x128xbf16>, vector<304x128xf32> -> vector<304x128xf32>
    %c0_4 = arith.constant 0 : index
    %c0_5 = arith.constant 0 : index
    %19 = vector.load %arg3[%c0_4, %c0_5] : memref<304x128xf32, #tpu.memory_space<vmem>>, vector<304x128xf32>
    tpu.vector_store %arg3[%c0_4, %c0_5], %18 {strides = array<i32>} : memref<304x128xf32, #tpu.memory_space<vmem>>, vector<304x128xf32>,
    return
  }
  func.func @transform_0(%arg0: i32) -> (i32, i32) {
    %c0_i32 = arith.constant 0 : i32
    %c0_i32_0 = arith.constant 0 : i32
    return %arg0, %c0_i32 : i32, i32
  }
  func.func @transform_1(%arg0: i32) -> (i32, i32) {
    %c0_i32 = arith.constant 0 : i32
    %c0_i32_0 = arith.constant 0 : i32
    %c0_i32_1 = arith.constant 0 : i32
    return %c0_i32, %c0_i32_0 : i32, i32
  }
  func.func @transform_2(%arg0: i32) -> (i32, i32) {
    %c0_i32 = arith.constant 0 : i32
    %c0_i32_0 = arith.constant 0 : i32
    return %arg0, %c0_i32 : i32, i32
  }
}

module attributes {stable_mosaic.version = 11 : i64} {
  func.func @_fused_embedding_kernel(%arg0: i32, %arg1: memref<304x2xi32, #tpu.memory_space<vmem>>, %arg2: memref<256x128xbf16, #tpu.memory_space<vmem>>, %arg3: memref<304x128xf32, #tpu.memory_space<vmem>>) attributes {dimension_semantics = [#tpu.dimension_semantics<parallel>], iteration_bounds = array<i64: 1>, scalar_prefetch = 0 : i64, scratch_operands = 0 : i64, tpu.core_type = #tpu.core_type<tc>, window_params = [{transform_indices = @transform_0, window_bounds = array<i64: 304, 2>}, {pipeline_mode = #tpu.pipeline_mode<synchronous>, transform_indices = @transform_1, window_bounds = array<i64: 256, 128>}, {transform_indices = @transform_2, window_bounds = array<i64: 304, 128>}]} {
    %0 = tpu.iota {dimensions = array<i32: 1>} : vector<1x128xi32>
    %c0 = arith.constant 0 : index
    %c0_0 = arith.constant 0 : index
    %1 = vector.load %arg1[%c0, %c0_0] : memref<304x2xi32, #tpu.memory_space<vmem>>, vector<304x1xi32>
    %2 = vector.broadcast %1 : vector<304x1xi32> to vector<304x128xi32>
    %3 = vector.broadcast %0 : vector<1x128xi32> to vector<304x128xi32>
    %4 = arith.cmpi eq, %2, %3 : vector<304x128xi32>
    %5 = arith.extui %4 : vector<304x128xi1> to vector<304x128xi32>
    %6 = arith.sitofp %5 : vector<304x128xi32> to vector<304x128xf32>
    %7 = arith.truncf %6 : vector<304x128xf32> to vector<304x128xbf16>
    %8 = tpu.iota {dimensions = array<i32: 1>} : vector<1x128xi32>
    %c0_1 = arith.constant 0 : index
    %c1 = arith.constant 1 : index
    %9 = vector.load %arg1[%c0_1, %c1] : memref<304x2xi32, #tpu.memory_space<vmem>>, vector<304x1xi32>
    %10 = vector.broadcast %9 : vector<304x1xi32> to vector<304x128xi32>
    %11 = vector.broadcast %8 : vector<1x128xi32> to vector<304x128xi32>
    %12 = arith.cmpi eq, %10, %11 : vector<304x128xi32>
    %13 = arith.extui %12 : vector<304x128xi1> to vector<304x128xi32>
    %14 = arith.sitofp %13 : vector<304x128xi32> to vector<304x128xf32>
    %15 = arith.truncf %14 : vector<304x128xf32> to vector<304x128xbf16>
    %16 = tpu.concatenate %7, %15 in 1 : vector<304x128xbf16>, vector<304x128xbf16> -> vector<304x256xbf16>
    %c0_2 = arith.constant 0 : index
    %c0_3 = arith.constant 0 : index
    %17 = vector.load %arg2[%c0_2, %c0_3] : memref<256x128xbf16, #tpu.memory_space<vmem>>, vector<256x128xbf16>
    %cst = arith.constant dense<0.000000e+00> : vector<304x128xf32>
    %18 = tpu.matmul %16, %17, %cst {dimension_numbers = #tpu.dot_dimension_numbers<[1], [0], [0], [1], [0, 0, 1, 1], [], []>} : vector<304x256xbf16>, vector<256x128xbf16>, vector<304x128xf32> -> vector<304x128xf32>
    %c0_4 = arith.constant 0 : index
    %c0_5 = arith.constant 0 : index
    %19 = vector.load %arg3[%c0_4, %c0_5] : memref<304x128xf32, #tpu.memory_space<vmem>>, vector<304x128xf32>
    tpu.vector_store %arg3[%c0_4, %c0_5], %18 {strides = array<i32>} : memref<304x128xf32, #tpu.memory_space<vmem>>, vector<304x128xf32>,
    return
  }
  func.func @transform_0(%arg0: i32) -> (i32, i32) {
    %c0_i32 = arith.constant 0 : i32
    %c0_i32_0 = arith.constant 0 : i32
    return %arg0, %c0_i32 : i32, i32
  }
  func.func @transform_1(%arg0: i32) -> (i32, i32) {
    %c0_i32 = arith.constant 0 : i32
    %c0_i32_0 = arith.constant 0 : i32
    %c0_i32_1 = arith.constant 0 : i32
    return %c0_i32, %c0_i32_0 : i32, i32
  }
  func.func @transform_2(%arg0: i32) -> (i32, i32) {
    %c0_i32 = arith.constant 0 : i32
    %c0_i32_0 = arith.constant 0 : i32
    return %arg0, %c0_i32 : i32, i32
  }
}

</mosaic_0001>

<llo_original>
// kernel: tpu_custom_call.1
$region0: #{tpu_custom_call.1}
  #allocation0 [shape = 'u32[]', space=smem, size = 0x4, offset = 0x4, fixed_abs, tag = 'smem constant byte address 0x4 - core index']
  #allocation1 [shape = 'u32[144,128]{1,0:T(1,128)}', space=vmem, size = 0x12000, scoped, tag = 'internal scratch']
  %s0 = inlined_call_operand.vmem [shape: s32[304,2], index: 0, kind: input, shape index: {}]
  %s1 = inlined_call_operand.vmem [shape: bf16[256,128], index: 1, kind: input, shape index: {}]
  %s2 = inlined_call_operand.hbm [shape: f32[304,128], index: 2, kind: output, shape index: {}]
  %s3 = sld [smem:[#allocation0]]
  $region18: #{tpu_custom_call.1} parent=0
    _
  %s5 = ssub.s32 1, %s3
  %s6 = scalar_select 0, %s5, %s3
  $region1: #{tpu_custom_call.1} parent=0
    #allocation2 [shape = 'u8[155648]{0}', space=vmem, size = 0x26000, scoped, tag = 'output window, operand 0, single buffered']
    #allocation3 [shape = 's32[1]{0}', space=sflag, size = 0x4, scoped, tag = 'scoped memory for tpu_custom_call.1']
    %7 = vsyncpa [#allocation3], 0
    // Predicated region
    $region2: #{tpu_custom_call.1} parent=1 // pred_check
      _
    $region3: #{tpu_custom_call.1} parent=1 // pred_check_branch
      %9 = sbr.rel (0) target = $region5
    $region4: #{tpu_custom_call.1} parent=1 // pred_region
      _
    $region5: #{tpu_custom_call.1} parent=1 // pred_fallthru
      _
    // Predicated region
    $region6: #{tpu_custom_call.1} parent=1 // pred_check
      _
    $region7: #{tpu_custom_call.1} parent=1 // pred_check_branch
      %11 = sbr.rel (0) target = $region9
    $region8: #{tpu_custom_call.1} parent=1 // pred_region
      _
    $region9: #{tpu_custom_call.1} parent=1 // pred_fallthru
      _
    %v13 = vlaneseq
    %v14 = vand.u32 %v13, 127
    %v15 = vld [vmem:[%s0] sm:$0xff]
    %v16 = vld [vmem:[%s0 + $0x8] sm:$0xff]
    %v17 = vld [vmem:[%s0 + $0x10] sm:$0xff]
    %v18 = vld [vmem:[%s0 + $0x18] sm:$0xff]
    %v19 = vld [vmem:[%s0 + $0x20] sm:$0xff]
    %v20 = vld [vmem:[%s0 + $0x28] sm:$0xff]
    %v21 = vld [vmem:[%s0 + $0x30] sm:$0xff]
    %v22 = vld [vmem:[%s0 + $0x38] sm:$0xff]
    %v23 = vld [vmem:[%s0 + $0x40] sm:$0xff]
    %v24 = vld [vmem:[%s0 + $0x48] sm:$0xff]
    %v25 = vld [vmem:[%s0 + $0x50] sm:$0xff]
    %v26 = vld [vmem:[%s0 + $0x58] sm:$0xff]
    %v27 = vld [vmem:[%s0 + $0x60] sm:$0xff]
    %v28 = vld [vmem:[%s0 + $0x68] sm:$0xff]
    %v29 = vld [vmem:[%s0 + $0x70] sm:$0xff]
    %v30 = vld [vmem:[%s0 + $0x78] sm:$0xff]
    %v31 = vld [vmem:[%s0 + $0x80] sm:$0xff]
    %v32 = vld [vmem:[%s0 + $0x88] sm:$0xff]
    %v33 = vld [vmem:[%s0 + $0x90] sm:$0xff]
    %v34 = vld [vmem:[%s0 + $0x98] sm:$0xff]
    %v35 = vld [vmem:[%s0 + $0xa0] sm:$0xff]
    %v36 = vld [vmem:[%s0 + $0xa8] sm:$0xff]
    %v37 = vld [vmem:[%s0 + $0xb0] sm:$0xff]
    %v38 = vld [vmem:[%s0 + $0xb8] sm:$0xff]
    %v39 = vld [vmem:[%s0 + $0xc0] sm:$0xff]
    %v40 = vld [vmem:[%s0 + $0xc8] sm:$0xff]
    %v41 = vld [vmem:[%s0 + $0xd0] sm:$0xff]
    %v42 = vld [vmem:[%s0 + $0xd8] sm:$0xff]
    %v43 = vld [vmem:[%s0 + $0xe0] sm:$0xff]
    %v44 = vld [vmem:[%s0 + $0xe8] sm:$0xff]
    %v45 = vld [vmem:[%s0 + $0xf0] sm:$0xff]
    %v46 = vld [vmem:[%s0 + $0xf8] sm:$0xff]
    %v47 = vld [vmem:[%s0 + $0x100] sm:$0xff]
    %v48 = vld [vmem:[%s0 + $0x108] sm:$0xff]
    %v49 = vld [vmem:[%s0 + $0x110] sm:$0xff]
    %v50 = vld [vmem:[%s0 + $0x118] sm:$0xff]
    %v51 = vld [vmem:[%s0 + $0x120] sm:$0xff]
    %v52 = vld [vmem:[%s0 + $0x128] sm:$0xff]
    %53 = vset.pattern.permute.xlu0 0
    %54 = vperm.xlu0 %53, %v15
    %v55 = vpop.permute.xlu0 %54
    %56 = vset.pattern.permute.xlu0 0
    %57 = vperm.xlu0 %56, %v16
    %v58 = vpop.permute.xlu0 %57
    %59 = vset.pattern.permute.xlu0 0
    %60 = vperm.xlu0 %59, %v17
    %v61 = vpop.permute.xlu0 %60
    %62 = vset.pattern.permute.xlu0 0
    %63 = vperm.xlu0 %62, %v18
    %v64 = vpop.permute.xlu0 %63
    %65 = vset.pattern.permute.xlu0 0
    %66 = vperm.xlu0 %65, %v19
    %v67 = vpop.permute.xlu0 %66
    %68 = vset.pattern.permute.xlu0 0
    %69 = vperm.xlu0 %68, %v20
    %v70 = vpop.permute.xlu0 %69
    %71 = vset.pattern.permute.xlu0 0
    %72 = vperm.xlu0 %71, %v21
    %v73 = vpop.permute.xlu0 %72
    %74 = vset.pattern.permute.xlu0 0
    %75 = vperm.xlu0 %74, %v22
    %v76 = vpop.permute.xlu0 %75
    %77 = vset.pattern.permute.xlu0 0
    %78 = vperm.xlu0 %77, %v23
    %v79 = vpop.permute.xlu0 %78
    %80 = vset.pattern.permute.xlu0 0
    %81 = vperm.xlu0 %80, %v24
    %v82 = vpop.permute.xlu0 %81
    %83 = vset.pattern.permute.xlu0 0
    %84 = vperm.xlu0 %83, %v25
    %v85 = vpop.permute.xlu0 %84
    %86 = vset.pattern.permute.xlu0 0
    %87 = vperm.xlu0 %86, %v26
    %v88 = vpop.permute.xlu0 %87
    %89 = vset.pattern.permute.xlu0 0
    %90 = vperm.xlu0 %89, %v27
    %v91 = vpop.permute.xlu0 %90
    %92 = vset.pattern.permute.xlu0 0
    %93 = vperm.xlu0 %92, %v28
    %v94 = vpop.permute.xlu0 %93
    %95 = vset.pattern.permute.xlu0 0
    %96 = vperm.xlu0 %95, %v29
    %v97 = vpop.permute.xlu0 %96
    %98 = vset.pattern.permute.xlu0 0
    %99 = vperm.xlu0 %98, %v30
    %v100 = vpop.permute.xlu0 %99
    %101 = vset.pattern.permute.xlu0 0
    %102 = vperm.xlu0 %101, %v31
    %v103 = vpop.permute.xlu0 %102
    %104 = vset.pattern.permute.xlu0 0
    %105 = vperm.xlu0 %104, %v32
    %v106 = vpop.permute.xlu0 %105
    %107 = vset.pattern.permute.xlu0 0
    %108 = vperm.xlu0 %107, %v33
    %v109 = vpop.permute.xlu0 %108
    %110 = vset.pattern.permute.xlu0 0
    %111 = vperm.xlu0 %110, %v34
    %v112 = vpop.permute.xlu0 %111
    %113 = vset.pattern.permute.xlu0 0
    %114 = vperm.xlu0 %113, %v35
    %v115 = vpop.permute.xlu0 %114
    %116 = vset.pattern.permute.xlu0 0
    %117 = vperm.xlu0 %116, %v36
    %v118 = vpop.permute.xlu0 %117
    %119 = vset.pattern.permute.xlu0 0
    %120 = vperm.xlu0 %119, %v37
    %v121 = vpop.permute.xlu0 %120
    %122 = vset.pattern.permute.xlu0 0
    %123 = vperm.xlu0 %122, %v38
    %v124 = vpop.permute.xlu0 %123
    %125 = vset.pattern.permute.xlu0 0
    %126 = vperm.xlu0 %125, %v39
    %v127 = vpop.permute.xlu0 %126
    %128 = vset.pattern.permute.xlu0 0
    %129 = vperm.xlu0 %128, %v40
    %v130 = vpop.permute.xlu0 %129
    %131 = vset.pattern.permute.xlu0 0
    %132 = vperm.xlu0 %131, %v41
    %v133 = vpop.permute.xlu0 %132
    %134 = vset.pattern.permute.xlu0 0
    %135 = vperm.xlu0 %134, %v42
    %v136 = vpop.permute.xlu0 %135
    %137 = vset.pattern.permute.xlu0 0
    %138 = vperm.xlu0 %137, %v43
    %v139 = vpop.permute.xlu0 %138
    %140 = vset.pattern.permute.xlu0 0
    %141 = vperm.xlu0 %140, %v44
    %v142 = vpop.permute.xlu0 %141
    %143 = vset.pattern.permute.xlu0 0
    %144 = vperm.xlu0 %143, %v45
    %v145 = vpop.permute.xlu0 %144
    %146 = vset.pattern.permute.xlu0 0
    %147 = vperm.xlu0 %146, %v46
    %v148 = vpop.permute.xlu0 %147
    %149 = vset.pattern.permute.xlu0 0
    %150 = vperm.xlu0 %149, %v47
    %v151 = vpop.permute.xlu0 %150
    %152 = vset.pattern.permute.xlu0 0
    %153 = vperm.xlu0 %152, %v48
    %v154 = vpop.permute.xlu0 %153
    %155 = vset.pattern.permute.xlu0 0
    %156 = vperm.xlu0 %155, %v49
    %v157 = vpop.permute.xlu0 %156
    %158 = vset.pattern.permute.xlu0 0
    %159 = vperm.xlu0 %158, %v50
    %v160 = vpop.permute.xlu0 %159
    %161 = vset.pattern.permute.xlu0 0
    %162 = vperm.xlu0 %161, %v51
    %v163 = vpop.permute.xlu0 %162
    %164 = vset.pattern.permute.xlu0 0
    %165 = vperm.xlu0 %164, %v52
    %v166 = vpop.permute.xlu0 %165
    %vm167 = vcmp.eq.s32.totalorder %v55, %v14
    %vm168 = vcmp.eq.s32.totalorder %v58, %v14
    %vm169 = vcmp.eq.s32.totalorder %v61, %v14
    %vm170 = vcmp.eq.s32.totalorder %v64, %v14
    %vm171 = vcmp.eq.s32.totalorder %v67, %v14
    %vm172 = vcmp.eq.s32.totalorder %v70, %v14
    %vm173 = vcmp.eq.s32.totalorder %v73, %v14
    %vm174 = vcmp.eq.s32.totalorder %v76, %v14
    %vm175 = vcmp.eq.s32.totalorder %v79, %v14
    %vm176 = vcmp.eq.s32.totalorder %v82, %v14
    %vm177 = vcmp.eq.s32.totalorder %v85, %v14
    %vm178 = vcmp.eq.s32.totalorder %v88, %v14
    %vm179 = vcmp.eq.s32.totalorder %v91, %v14
    %vm180 = vcmp.eq.s32.totalorder %v94, %v14
    %vm181 = vcmp.eq.s32.totalorder %v97, %v14
    %vm182 = vcmp.eq.s32.totalorder %v100, %v14
    %vm183 = vcmp.eq.s32.totalorder %v103, %v14
    %vm184 = vcmp.eq.s32.totalorder %v106, %v14
    %vm185 = vcmp.eq.s32.totalorder %v109, %v14
    %vm186 = vcmp.eq.s32.totalorder %v112, %v14
    %vm187 = vcmp.eq.s32.totalorder %v115, %v14
    %vm188 = vcmp.eq.s32.totalorder %v118, %v14
    %vm189 = vcmp.eq.s32.totalorder %v121, %v14
    %vm190 = vcmp.eq.s32.totalorder %v124, %v14
    %vm191 = vcmp.eq.s32.totalorder %v127, %v14
    %vm192 = vcmp.eq.s32.totalorder %v130, %v14
    %vm193 = vcmp.eq.s32.totalorder %v133, %v14
    %vm194 = vcmp.eq.s32.totalorder %v136, %v14
    %vm195 = vcmp.eq.s32.totalorder %v139, %v14
    %vm196 = vcmp.eq.s32.totalorder %v142, %v14
    %vm197 = vcmp.eq.s32.totalorder %v145, %v14
    %vm198 = vcmp.eq.s32.totalorder %v148, %v14
    %vm199 = vcmp.eq.s32.totalorder %v151, %v14
    %vm200 = vcmp.eq.s32.totalorder %v154, %v14
    %vm201 = vcmp.eq.s32.totalorder %v157, %v14
    %vm202 = vcmp.eq.s32.totalorder %v160, %v14
    %vm203 = vcmp.eq.s32.totalorder %v163, %v14
    %vm204 = vcmp.eq.s32.totalorder %v166, %v14
    %v205 = vsel %vm167, 1, 0
    %v206 = vsel %vm168, 1, 0
    %v207 = vsel %vm169, 1, 0
    %v208 = vsel %vm170, 1, 0
    %v209 = vsel %vm171, 1, 0
    %v210 = vsel %vm172, 1, 0
    %v211 = vsel %vm173, 1, 0
    %v212 = vsel %vm174, 1, 0
    %v213 = vsel %vm175, 1, 0
    %v214 = vsel %vm176, 1, 0
    %v215 = vsel %vm177, 1, 0
    %v216 = vsel %vm178, 1, 0
    %v217 = vsel %vm179, 1, 0
    %v218 = vsel %vm180, 1, 0
    %v219 = vsel %vm181, 1, 0
    %v220 = vsel %vm182, 1, 0
    %v221 = vsel %vm183, 1, 0
    %v222 = vsel %vm184, 1, 0
    %v223 = vsel %vm185, 1, 0
    %v224 = vsel %vm186, 1, 0
    %v225 = vsel %vm187, 1, 0
    %v226 = vsel %vm188, 1, 0
    %v227 = vsel %vm189, 1, 0
    %v228 = vsel %vm190, 1, 0
    %v229 = vsel %vm191, 1, 0
    %v230 = vsel %vm192, 1, 0
    %v231 = vsel %vm193, 1, 0
    %v232 = vsel %vm194, 1, 0
    %v233 = vsel %vm195, 1, 0
    %v234 = vsel %vm196, 1, 0
    %v235 = vsel %vm197, 1, 0
    %v236 = vsel %vm198, 1, 0
    %v237 = vsel %vm199, 1, 0
    %v238 = vsel %vm200, 1, 0
    %v239 = vsel %vm201, 1, 0
    %v240 = vsel %vm202, 1, 0
    %v241 = vsel %vm203, 1, 0
    %v242 = vsel %vm204, 1, 0
    %v243 = vcvt.s32.f32 %v205
    %v244 = vcvt.s32.f32 %v206
    %v245 = vcvt.s32.f32 %v207
    %v246 = vcvt.s32.f32 %v208
    %v247 = vcvt.s32.f32 %v209
    %v248 = vcvt.s32.f32 %v210
    %v249 = vcvt.s32.f32 %v211
    %v250 = vcvt.s32.f32 %v212
    %v251 = vcvt.s32.f32 %v213
    %v252 = vcvt.s32.f32 %v214
    %v253 = vcvt.s32.f32 %v215
    %v254 = vcvt.s32.f32 %v216
    %v255 = vcvt.s32.f32 %v217
    %v256 = vcvt.s32.f32 %v218
    %v257 = vcvt.s32.f32 %v219
    %v258 = vcvt.s32.f32 %v220
    %v259 = vcvt.s32.f32 %v221
    %v260 = vcvt.s32.f32 %v222
    %v261 = vcvt.s32.f32 %v223
    %v262 = vcvt.s32.f32 %v224
    %v263 = vcvt.s32.f32 %v225
    %v264 = vcvt.s32.f32 %v226
    %v265 = vcvt.s32.f32 %v227
    %v266 = vcvt.s32.f32 %v228
    %v267 = vcvt.s32.f32 %v229
    %v268 = vcvt.s32.f32 %v230
    %v269 = vcvt.s32.f32 %v231
    %v270 = vcvt.s32.f32 %v232
    %v271 = vcvt.s32.f32 %v233
    %v272 = vcvt.s32.f32 %v234
    %v273 = vcvt.s32.f32 %v235
    %v274 = vcvt.s32.f32 %v236
    %v275 = vcvt.s32.f32 %v237
    %v276 = vcvt.s32.f32 %v238
    %v277 = vcvt.s32.f32 %v239
    %v278 = vcvt.s32.f32 %v240
    %v279 = vcvt.s32.f32 %v241
    %v280 = vcvt.s32.f32 %v242
    %v281 = vpack.c.bf16 %v244, %v243
    %v282 = vpack.c.bf16 %v246, %v245
    %v283 = vpack.c.bf16 %v248, %v247
    %v284 = vpack.c.bf16 %v250, %v249
    %v285 = vpack.c.bf16 %v252, %v251
    %v286 = vpack.c.bf16 %v254, %v253
    %v287 = vpack.c.bf16 %v256, %v255
    %v288 = vpack.c.bf16 %v258, %v257
    %v289 = vpack.c.bf16 %v260, %v259
    %v290 = vpack.c.bf16 %v262, %v261
    %v291 = vpack.c.bf16 %v264, %v263
    %v292 = vpack.c.bf16 %v266, %v265
    %v293 = vpack.c.bf16 %v268, %v267
    %v294 = vpack.c.bf16 %v270, %v269
    %v295 = vpack.c.bf16 %v272, %v271
    %v296 = vpack.c.bf16 %v274, %v273
    %v297 = vpack.c.bf16 %v276, %v275
    %v298 = vpack.c.bf16 %v278, %v277
    %v299 = vpack.c.bf16 %v280, %v279
    %300 = vset.pattern.permute.xlu0 1
    %301 = vperm.xlu0 %300, %v15
    %v302 = vpop.permute.xlu0 %301
    %303 = vset.pattern.permute.xlu0 1
    %304 = vperm.xlu0 %303, %v16
    %v305 = vpop.permute.xlu0 %304
    %306 = vset.pattern.permute.xlu0 1
    %307 = vperm.xlu0 %306, %v17
    %v308 = vpop.permute.xlu0 %307
    %309 = vset.pattern.permute.xlu0 1
    %310 = vperm.xlu0 %309, %v18
    %v311 = vpop.permute.xlu0 %310
    %312 = vset.pattern.permute.xlu0 1
    %313 = vperm.xlu0 %312, %v19
    %v314 = vpop.permute.xlu0 %313
    %315 = vset.pattern.permute.xlu0 1
    %316 = vperm.xlu0 %315, %v20
    %v317 = vpop.permute.xlu0 %316
    %318 = vset.pattern.permute.xlu0 1
    %319 = vperm.xlu0 %318, %v21
    %v320 = vpop.permute.xlu0 %319
    %321 = vset.pattern.permute.xlu0 1
    %322 = vperm.xlu0 %321, %v22
    %v323 = vpop.permute.xlu0 %322
    %324 = vset.pattern.permute.xlu0 1
    %325 = vperm.xlu0 %324, %v23
    %v326 = vpop.permute.xlu0 %325
    %327 = vset.pattern.permute.xlu0 1
    %328 = vperm.xlu0 %327, %v24
    %v329 = vpop.permute.xlu0 %328
    %330 = vset.pattern.permute.xlu0 1
    %331 = vperm.xlu0 %330, %v25
    %v332 = vpop.permute.xlu0 %331
    %333 = vset.pattern.permute.xlu0 1
    %334 = vperm.xlu0 %333, %v26
    %v335 = vpop.permute.xlu0 %334
    %336 = vset.pattern.permute.xlu0 1
    %337 = vperm.xlu0 %336, %v27
    %v338 = vpop.permute.xlu0 %337
    %339 = vset.pattern.permute.xlu0 1
    %340 = vperm.xlu0 %339, %v28
    %v341 = vpop.permute.xlu0 %340
    %342 = vset.pattern.permute.xlu0 1
    %343 = vperm.xlu0 %342, %v29
    %v344 = vpop.permute.xlu0 %343
    %345 = vset.pattern.permute.xlu0 1
    %346 = vperm.xlu0 %345, %v30
    %v347 = vpop.permute.xlu0 %346
    %348 = vset.pattern.permute.xlu0 1
    %349 = vperm.xlu0 %348, %v31
    %v350 = vpop.permute.xlu0 %349
    %351 = vset.pattern.permute.xlu0 1
    %352 = vperm.xlu0 %351, %v32
    %v353 = vpop.permute.xlu0 %352
    %354 = vset.pattern.permute.xlu0 1
    %355 = vperm.xlu0 %354, %v33
    %v356 = vpop.permute.xlu0 %355
    %357 = vset.pattern.permute.xlu0 1
    %358 = vperm.xlu0 %357, %v34
    %v359 = vpop.permute.xlu0 %358
    %360 = vset.pattern.permute.xlu0 1
    %361 = vperm.xlu0 %360, %v35
    %v362 = vpop.permute.xlu0 %361
    %363 = vset.pattern.permute.xlu0 1
    %364 = vperm.xlu0 %363, %v36
    %v365 = vpop.permute.xlu0 %364
    %366 = vset.pattern.permute.xlu0 1
    %367 = vperm.xlu0 %366, %v37
    %v368 = vpop.permute.xlu0 %367
    %369 = vset.pattern.permute.xlu0 1
    %370 = vperm.xlu0 %369, %v38
    %v371 = vpop.permute.xlu0 %370
    %372 = vset.pattern.permute.xlu0 1
    %373 = vperm.xlu0 %372, %v39
    %v374 = vpop.permute.xlu0 %373
    %375 = vset.pattern.permute.xlu0 1
    %376 = vperm.xlu0 %375, %v40
    %v377 = vpop.permute.xlu0 %376
    %378 = vset.pattern.permute.xlu0 1
    %379 = vperm.xlu0 %378, %v41
    %v380 = vpop.permute.xlu0 %379
    %381 = vset.pattern.permute.xlu0 1
    %382 = vperm.xlu0 %381, %v42
    %v383 = vpop.permute.xlu0 %382
    %384 = vset.pattern.permute.xlu0 1
    %385 = vperm.xlu0 %384, %v43
    %v386 = vpop.permute.xlu0 %385
    %387 = vset.pattern.permute.xlu0 1
    %388 = vperm.xlu0 %387, %v44
    %v389 = vpop.permute.xlu0 %388
    %390 = vset.pattern.permute.xlu0 1
    %391 = vperm.xlu0 %390, %v45
    %v392 = vpop.permute.xlu0 %391
    %393 = vset.pattern.permute.xlu0 1
    %394 = vperm.xlu0 %393, %v46
    %v395 = vpop.permute.xlu0 %394
    %396 = vset.pattern.permute.xlu0 1
    %397 = vperm.xlu0 %396, %v47
    %v398 = vpop.permute.xlu0 %397
    %399 = vset.pattern.permute.xlu0 1
    %400 = vperm.xlu0 %399, %v48
    %v401 = vpop.permute.xlu0 %400
    %402 = vset.pattern.permute.xlu0 1
    %403 = vperm.xlu0 %402, %v49
    %v404 = vpop.permute.xlu0 %403
    %405 = vset.pattern.permute.xlu0 1
    %406 = vperm.xlu0 %405, %v50
    %v407 = vpop.permute.xlu0 %406
    %408 = vset.pattern.permute.xlu0 1
    %409 = vperm.xlu0 %408, %v51
    %v410 = vpop.permute.xlu0 %409
    %411 = vset.pattern.permute.xlu0 1
    %412 = vperm.xlu0 %411, %v52
    %v413 = vpop.permute.xlu0 %412
    %vm414 = vcmp.eq.s32.totalorder %v302, %v14
    %vm415 = vcmp.eq.s32.totalorder %v305, %v14
    %vm416 = vcmp.eq.s32.totalorder %v308, %v14
    %vm417 = vcmp.eq.s32.totalorder %v311, %v14
    %vm418 = vcmp.eq.s32.totalorder %v314, %v14
    %vm419 = vcmp.eq.s32.totalorder %v317, %v14
    %vm420 = vcmp.eq.s32.totalorder %v320, %v14
    %vm421 = vcmp.eq.s32.totalorder %v323, %v14
    %vm422 = vcmp.eq.s32.totalorder %v326, %v14
    %vm423 = vcmp.eq.s32.totalorder %v329, %v14
    %vm424 = vcmp.eq.s32.totalorder %v332, %v14
    %vm425 = vcmp.eq.s32.totalorder %v335, %v14
    %vm426 = vcmp.eq.s32.totalorder %v338, %v14
    %vm427 = vcmp.eq.s32.totalorder %v341, %v14
    %vm428 = vcmp.eq.s32.totalorder %v344, %v14
    %vm429 = vcmp.eq.s32.totalorder %v347, %v14
    %vm430 = vcmp.eq.s32.totalorder %v350, %v14
    %vm431 = vcmp.eq.s32.totalorder %v353, %v14
    %vm432 = vcmp.eq.s32.totalorder %v356, %v14
    %vm433 = vcmp.eq.s32.totalorder %v359, %v14
    %vm434 = vcmp.eq.s32.totalorder %v362, %v14
    %vm435 = vcmp.eq.s32.totalorder %v365, %v14
    %vm436 = vcmp.eq.s32.totalorder %v368, %v14
    %vm437 = vcmp.eq.s32.totalorder %v371, %v14
    %vm438 = vcmp.eq.s32.totalorder %v374, %v14
    %vm439 = vcmp.eq.s32.totalorder %v377, %v14
    %vm440 = vcmp.eq.s32.totalorder %v380, %v14
    %vm441 = vcmp.eq.s32.totalorder %v383, %v14
    %vm442 = vcmp.eq.s32.totalorder %v386, %v14
    %vm443 = vcmp.eq.s32.totalorder %v389, %v14
    %vm444 = vcmp.eq.s32.totalorder %v392, %v14
    %vm445 = vcmp.eq.s32.totalorder %v395, %v14
    %vm446 = vcmp.eq.s32.totalorder %v398, %v14
    %vm447 = vcmp.eq.s32.totalorder %v401, %v14
    %vm448 = vcmp.eq.s32.totalorder %v404, %v14
    %vm449 = vcmp.eq.s32.totalorder %v407, %v14
    %vm450 = vcmp.eq.s32.totalorder %v410, %v14
    %vm451 = vcmp.eq.s32.totalorder %v413, %v14
    %v452 = vsel %vm414, 1, 0
    %v453 = vsel %vm415, 1, 0
    %v454 = vsel %vm416, 1, 0
    %v455 = vsel %vm417, 1, 0
    %v456 = vsel %vm418, 1, 0
    %v457 = vsel %vm419, 1, 0
    %v458 = vsel %vm420, 1, 0
    %v459 = vsel %vm421, 1, 0
    %v460 = vsel %vm422, 1, 0
    %v461 = vsel %vm423, 1, 0
    %v462 = vsel %vm424, 1, 0
    %v463 = vsel %vm425, 1, 0
    %v464 = vsel %vm426, 1, 0
    %v465 = vsel %vm427, 1, 0
    %v466 = vsel %vm428, 1, 0
    %v467 = vsel %vm429, 1, 0
    %v468 = vsel %vm430, 1, 0
    %v469 = vsel %vm431, 1, 0
    %v470 = vsel %vm432, 1, 0
    %v471 = vsel %vm433, 1, 0
    %v472 = vsel %vm434, 1, 0
    %v473 = vsel %vm435, 1, 0
    %v474 = vsel %vm436, 1, 0
    %v475 = vsel %vm437, 1, 0
    %v476 = vsel %vm438, 1, 0
    %v477 = vsel %vm439, 1, 0
    %v478 = vsel %vm440, 1, 0
    %v479 = vsel %vm441, 1, 0
    %v480 = vsel %vm442, 1, 0
    %v481 = vsel %vm443, 1, 0
    %v482 = vsel %vm444, 1, 0
    %v483 = vsel %vm445, 1, 0
    %v484 = vsel %vm446, 1, 0
    %v485 = vsel %vm447, 1, 0
    %v486 = vsel %vm448, 1, 0
    %v487 = vsel %vm449, 1, 0
    %v488 = vsel %vm450, 1, 0
    %v489 = vsel %vm451, 1, 0
    %v490 = vcvt.s32.f32 %v452
    %v491 = vcvt.s32.f32 %v453
    %v492 = vcvt.s32.f32 %v454
    %v493 = vcvt.s32.f32 %v455
    %v494 = vcvt.s32.f32 %v456
    %v495 = vcvt.s32.f32 %v457
    %v496 = vcvt.s32.f32 %v458
    %v497 = vcvt.s32.f32 %v459
    %v498 = vcvt.s32.f32 %v460
    %v499 = vcvt.s32.f32 %v461
    %v500 = vcvt.s32.f32 %v462
    %v501 = vcvt.s32.f32 %v463
    %v502 = vcvt.s32.f32 %v464
    %v503 = vcvt.s32.f32 %v465
    %v504 = vcvt.s32.f32 %v466
    %v505 = vcvt.s32.f32 %v467
    %v506 = vcvt.s32.f32 %v468
    %v507 = vcvt.s32.f32 %v469
    %v508 = vcvt.s32.f32 %v470
    %v509 = vcvt.s32.f32 %v471
    %v510 = vcvt.s32.f32 %v472
    %v511 = vcvt.s32.f32 %v473
    %v512 = vcvt.s32.f32 %v474
    %v513 = vcvt.s32.f32 %v475
    %v514 = vcvt.s32.f32 %v476
    %v515 = vcvt.s32.f32 %v477
    %v516 = vcvt.s32.f32 %v478
    %v517 = vcvt.s32.f32 %v479
    %v518 = vcvt.s32.f32 %v480
    %v519 = vcvt.s32.f32 %v481
    %v520 = vcvt.s32.f32 %v482
    %v521 = vcvt.s32.f32 %v483
    %v522 = vcvt.s32.f32 %v484
    %v523 = vcvt.s32.f32 %v485
    %v524 = vcvt.s32.f32 %v486
    %v525 = vcvt.s32.f32 %v487
    %v526 = vcvt.s32.f32 %v488
    %v527 = vcvt.s32.f32 %v489
    %v528 = vpack.c.bf16 %v491, %v490
    %v529 = vpack.c.bf16 %v493, %v492
    %v530 = vpack.c.bf16 %v495, %v494
    %v531 = vpack.c.bf16 %v497, %v496
    %v532 = vpack.c.bf16 %v499, %v498
    %v533 = vpack.c.bf16 %v501, %v500
    %v534 = vpack.c.bf16 %v503, %v502
    %v535 = vpack.c.bf16 %v505, %v504
    %v536 = vpack.c.bf16 %v507, %v506
    %v537 = vpack.c.bf16 %v509, %v508
    %v538 = vpack.c.bf16 %v511, %v510
    %v539 = vpack.c.bf16 %v513, %v512
    %v540 = vpack.c.bf16 %v515, %v514
    %v541 = vpack.c.bf16 %v517, %v516
    %v542 = vpack.c.bf16 %v519, %v518
    %v543 = vpack.c.bf16 %v521, %v520
    %v544 = vpack.c.bf16 %v523, %v522
    %v545 = vpack.c.bf16 %v525, %v524
    %v546 = vpack.c.bf16 %v527, %v526
    %v547 = vld [vmem:[%s1] sm:$0xf]
    %v548 = vld [vmem:[%s1 + $0x4] sm:$0xf]
    %v549 = vld [vmem:[%s1 + $0x8] sm:$0xf]
    %v550 = vld [vmem:[%s1 + $0xc] sm:$0xf]
    %v551 = vld [vmem:[%s1 + $0x10] sm:$0xf]
    %v552 = vld [vmem:[%s1 + $0x14] sm:$0xf]
    %v553 = vld [vmem:[%s1 + $0x18] sm:$0xf]
    %v554 = vld [vmem:[%s1 + $0x1c] sm:$0xf]
    %v555 = vld [vmem:[%s1 + $0x20] sm:$0xf]
    %v556 = vld [vmem:[%s1 + $0x24] sm:$0xf]
    %v557 = vld [vmem:[%s1 + $0x28] sm:$0xf]
    %v558 = vld [vmem:[%s1 + $0x2c] sm:$0xf]
    %v559 = vld [vmem:[%s1 + $0x30] sm:$0xf]
    %v560 = vld [vmem:[%s1 + $0x34] sm:$0xf]
    %v561 = vld [vmem:[%s1 + $0x38] sm:$0xf]
    %v562 = vld [vmem:[%s1 + $0x3c] sm:$0xf]
    %v563 = vld [vmem:[%s1 + $0x40] sm:$0xf]
    %v564 = vld [vmem:[%s1 + $0x44] sm:$0xf]
    %v565 = vld [vmem:[%s1 + $0x48] sm:$0xf]
    %v566 = vld [vmem:[%s1 + $0x4c] sm:$0xf]
    %v567 = vld [vmem:[%s1 + $0x50] sm:$0xf]
    %v568 = vld [vmem:[%s1 + $0x54] sm:$0xf]
    %v569 = vld [vmem:[%s1 + $0x58] sm:$0xf]
    %v570 = vld [vmem:[%s1 + $0x5c] sm:$0xf]
    %v571 = vld [vmem:[%s1 + $0x60] sm:$0xf]
    %v572 = vld [vmem:[%s1 + $0x64] sm:$0xf]
    %v573 = vld [vmem:[%s1 + $0x68] sm:$0xf]
    %v574 = vld [vmem:[%s1 + $0x6c] sm:$0xf]
    %v575 = vld [vmem:[%s1 + $0x70] sm:$0xf]
    %v576 = vld [vmem:[%s1 + $0x74] sm:$0xf]
    %v577 = vld [vmem:[%s1 + $0x78] sm:$0xf]
    %v578 = vld [vmem:[%s1 + $0x7c] sm:$0xf]
    %v611 = vunpack.c.l.b16 %v547
    %v612 = vunpack.c.l.b16 %v548
    %v613 = vunpack.c.l.b16 %v549
    %v614 = vunpack.c.l.b16 %v550
    %v615 = vunpack.c.l.b16 %v551
    %v616 = vunpack.c.l.b16 %v552
    %v617 = vunpack.c.l.b16 %v553
    %v618 = vunpack.c.l.b16 %v554
    %v619 = vunpack.c.l.b16 %v555
    %v620 = vunpack.c.l.b16 %v556
    %v621 = vunpack.c.l.b16 %v557
    %v622 = vunpack.c.l.b16 %v558
    %v623 = vunpack.c.l.b16 %v559
    %v624 = vunpack.c.l.b16 %v560
    %v625 = vunpack.c.l.b16 %v561
    %v626 = vunpack.c.l.b16 %v562
    %v627 = vunpack.c.l.b16 %v563
    %v628 = vunpack.c.l.b16 %v564
    %v629 = vunpack.c.l.b16 %v565
    %v630 = vunpack.c.l.b16 %v566
    %v631 = vunpack.c.l.b16 %v567
    %v632 = vunpack.c.l.b16 %v568
    %v633 = vunpack.c.l.b16 %v569
    %v634 = vunpack.c.l.b16 %v570
    %v635 = vunpack.c.l.b16 %v571
    %v636 = vunpack.c.l.b16 %v572
    %v637 = vunpack.c.l.b16 %v573
    %v638 = vunpack.c.l.b16 %v574
    %v639 = vunpack.c.l.b16 %v575
    %v640 = vunpack.c.l.b16 %v576
    %v641 = vunpack.c.l.b16 %v577
    %v642 = vunpack.c.l.b16 %v578
    %v643 = vpack.c.b16 %v612, %v611
    %v644 = vpack.c.b16 %v614, %v613
    %v645 = vpack.c.b16 %v616, %v615
    %v646 = vpack.c.b16 %v618, %v617
    %v647 = vpack.c.b16 %v620, %v619
    %v648 = vpack.c.b16 %v622, %v621
    %v649 = vpack.c.b16 %v624, %v623
    %v650 = vpack.c.b16 %v626, %v625
    %v651 = vpack.c.b16 %v628, %v627
    %v652 = vpack.c.b16 %v630, %v629
    %v653 = vpack.c.b16 %v632, %v631
    %v654 = vpack.c.b16 %v634, %v633
    %v655 = vpack.c.b16 %v636, %v635
    %v656 = vpack.c.b16 %v638, %v637
    %v657 = vpack.c.b16 %v640, %v639
    %v658 = vpack.c.b16 %v642, %v641
    %675 = vmatprep.subr.bf16.mxu0 0
    %676 = vmatpush1.bf16.msra.mxu0 %v643
    %677 = vmatprep.subr.bf16.mxu0 0
    %678 = vmatpush1.bf16.msra.mxu0 %v644
    %679 = vmatprep.subr.bf16.mxu0 0
    %680 = vmatpush1.bf16.msra.mxu0 %v645
    %681 = vmatprep.subr.bf16.mxu0 0
    %682 = vmatpush1.bf16.msra.mxu0 %v646
    %683 = vmatprep.subr.bf16.mxu0 0
    %684 = vmatpush1.bf16.msra.mxu0 %v647
    %685 = vmatprep.subr.bf16.mxu0 0
    %686 = vmatpush1.bf16.msra.mxu0 %v648
    %687 = vmatprep.subr.bf16.mxu0 0
    %688 = vmatpush1.bf16.msra.mxu0 %v649
    %689 = vmatprep.subr.bf16.mxu0 0
    %690 = vmatpush1.bf16.msra.mxu0 %v650
    %691 = vmatprep.subr.bf16.mxu0 0
    %692 = vmatpush1.bf16.msra.mxu0 %v651
    %693 = vmatprep.subr.bf16.mxu0 0
    %694 = vmatpush1.bf16.msra.mxu0 %v652
    %695 = vmatprep.subr.bf16.mxu0 0
    %696 = vmatpush1.bf16.msra.mxu0 %v653
    %697 = vmatprep.subr.bf16.mxu0 0
    %698 = vmatpush1.bf16.msra.mxu0 %v654
    %699 = vmatprep.subr.bf16.mxu0 0
    %700 = vmatpush1.bf16.msra.mxu0 %v655
    %701 = vmatprep.subr.bf16.mxu0 0
    %702 = vmatpush1.bf16.msra.mxu0 %v656
    %703 = vmatprep.subr.bf16.mxu0 0
    %704 = vmatpush1.bf16.msra.mxu0 %v657
    %705 = vmatprep.subr.bf16.mxu0 0
    %706 = vmatpush1.bf16.msra.mxu0 %v658
    %707 = vmatprep.mubr.bf16.mxu0 %v528
    %708 = vmatmul.mubr.bf16.gmra.mrb[0].mxu0 %v281
    %v709 = vpop.f32.mrb[0].mxu0
    %v710 = vadd.f32 0.0, %v709
    %v711 = vpop.f32.mrb[0].mxu0
    %v712 = vpop.f32.mrb[0].mxu0
    %v713 = vadd.f32 0.0, %v712
    %v714 = vpop.f32.mrb[0].mxu0
    %715 = vmatprep.mubr.bf16.mxu0 %v529
    %716 = vmatmul.mubr.bf16.gmra.mrb[0].mxu0 %v282
    %v717 = vpop.f32.mrb[0].mxu0
    %v718 = vadd.f32 0.0, %v717
    %v719 = vpop.f32.mrb[0].mxu0
    %v720 = vpop.f32.mrb[0].mxu0
    %v721 = vadd.f32 0.0, %v720
    %v722 = vpop.f32.mrb[0].mxu0
    %723 = vmatprep.mubr.bf16.mxu0 %v530
    %724 = vmatmul.mubr.bf16.gmra.mrb[0].mxu0 %v283
    %v725 = vpop.f32.mrb[0].mxu0
    %v726 = vadd.f32 0.0, %v725
    %v727 = vpop.f32.mrb[0].mxu0
    %v728 = vpop.f32.mrb[0].mxu0
    %v729 = vadd.f32 0.0, %v728
    %v730 = vpop.f32.mrb[0].mxu0
    %731 = vmatprep.mubr.bf16.mxu0 %v531
    %732 = vmatmul.mubr.bf16.gmra.mrb[0].mxu0 %v284
    %v733 = vpop.f32.mrb[0].mxu0
    %v734 = vadd.f32 0.0, %v733
    %v735 = vpop.f32.mrb[0].mxu0
    %v736 = vpop.f32.mrb[0].mxu0
    %v737 = vadd.f32 0.0, %v736
    %v738 = vpop.f32.mrb[0].mxu0
    %739 = vmatprep.mubr.bf16.mxu0 %v532
    %740 = vmatmul.mubr.bf16.gmra.mrb[0].mxu0 %v285
    %v741 = vpop.f32.mrb[0].mxu0
    %v742 = vadd.f32 0.0, %v741
    %v743 = vpop.f32.mrb[0].mxu0
    %v744 = vpop.f32.mrb[0].mxu0
    %v745 = vadd.f32 0.0, %v744
    %v746 = vpop.f32.mrb[0].mxu0
    %747 = vmatprep.mubr.bf16.mxu0 %v533
    %748 = vmatmul.mubr.bf16.gmra.mrb[0].mxu0 %v286
    %v749 = vpop.f32.mrb[0].mxu0
    %v750 = vadd.f32 0.0, %v749
    %v751 = vpop.f32.mrb[0].mxu0
    %v752 = vpop.f32.mrb[0].mxu0
    %v753 = vadd.f32 0.0, %v752
    %v754 = vpop.f32.mrb[0].mxu0
    %755 = vmatprep.mubr.bf16.mxu0 %v534
    %756 = vmatmul.mubr.bf16.gmra.mrb[0].mxu0 %v287
    %v757 = vpop.f32.mrb[0].mxu0
    %v758 = vadd.f32 0.0, %v757
    %v759 = vpop.f32.mrb[0].mxu0
    %v760 = vpop.f32.mrb[0].mxu0
    %v761 = vadd.f32 0.0, %v760
    %v762 = vpop.f32.mrb[0].mxu0
    %763 = vmatprep.mubr.bf16.mxu0 %v535
    %764 = vmatmul.mubr.bf16.gmra.mrb[0].mxu0 %v288
    %v765 = vpop.f32.mrb[0].mxu0
    %v766 = vadd.f32 0.0, %v765
    %v767 = vpop.f32.mrb[0].mxu0
    %v768 = vpop.f32.mrb[0].mxu0
    %v769 = vadd.f32 0.0, %v768
    %v770 = vpop.f32.mrb[0].mxu0
    %771 = vmatprep.mubr.bf16.mxu0 %v536
    %772 = vmatmul.mubr.bf16.gmra.mrb[0].mxu0 %v289
    %v773 = vpop.f32.mrb[0].mxu0
    %v774 = vadd.f32 0.0, %v773
    %v775 = vpop.f32.mrb[0].mxu0
    %v776 = vpop.f32.mrb[0].mxu0
    %v777 = vadd.f32 0.0, %v776
    %v778 = vpop.f32.mrb[0].mxu0
    %779 = vmatprep.mubr.bf16.mxu0 %v537
    %780 = vmatmul.mubr.bf16.gmra.mrb[0].mxu0 %v290
    %v781 = vpop.f32.mrb[0].mxu0
    %v782 = vadd.f32 0.0, %v781
    %v783 = vpop.f32.mrb[0].mxu0
    %v784 = vpop.f32.mrb[0].mxu0
    %v785 = vadd.f32 0.0, %v784
    %v786 = vpop.f32.mrb[0].mxu0
    %787 = vmatprep.mubr.bf16.mxu0 %v538
    %788 = vmatmul.mubr.bf16.gmra.mrb[0].mxu0 %v291
    %v789 = vpop.f32.mrb[0].mxu0
    %v790 = vadd.f32 0.0, %v789
    %v791 = vpop.f32.mrb[0].mxu0
    %v792 = vpop.f32.mrb[0].mxu0
    %v793 = vadd.f32 0.0, %v792
    %v794 = vpop.f32.mrb[0].mxu0
    %795 = vmatprep.mubr.bf16.mxu0 %v539
    %796 = vmatmul.mubr.bf16.gmra.mrb[0].mxu0 %v292
    %v797 = vpop.f32.mrb[0].mxu0
    %v798 = vadd.f32 0.0, %v797
    %v799 = vpop.f32.mrb[0].mxu0
    %v800 = vpop.f32.mrb[0].mxu0
    %v801 = vadd.f32 0.0, %v800
    %v802 = vpop.f32.mrb[0].mxu0
    %803 = vmatprep.mubr.bf16.mxu0 %v540
    %804 = vmatmul.mubr.bf16.gmra.mrb[0].mxu0 %v293
    %v805 = vpop.f32.mrb[0].mxu0
    %v806 = vadd.f32 0.0, %v805
    %v807 = vpop.f32.mrb[0].mxu0
    %v808 = vpop.f32.mrb[0].mxu0
    %v809 = vadd.f32 0.0, %v808
    %v810 = vpop.f32.mrb[0].mxu0
    %811 = vmatprep.mubr.bf16.mxu0 %v541
    %812 = vmatmul.mubr.bf16.gmra.mrb[0].mxu0 %v294
    %v813 = vpop.f32.mrb[0].mxu0
    %v814 = vadd.f32 0.0, %v813
    %v815 = vpop.f32.mrb[0].mxu0
    %v816 = vpop.f32.mrb[0].mxu0
    %v817 = vadd.f32 0.0, %v816
    %v818 = vpop.f32.mrb[0].mxu0
    %819 = vmatprep.mubr.bf16.mxu0 %v542
    %820 = vmatmul.mubr.bf16.gmra.mrb[0].mxu0 %v295
    %v821 = vpop.f32.mrb[0].mxu0
    %v822 = vadd.f32 0.0, %v821
    %v823 = vpop.f32.mrb[0].mxu0
    %v824 = vpop.f32.mrb[0].mxu0
    %v825 = vadd.f32 0.0, %v824
    %v826 = vpop.f32.mrb[0].mxu0
    %827 = vmatprep.mubr.bf16.mxu0 %v543
    %828 = vmatmul.mubr.bf16.gmra.mrb[0].mxu0 %v296
    %v829 = vpop.f32.mrb[0].mxu0
    %v830 = vadd.f32 0.0, %v829
    %v831 = vpop.f32.mrb[0].mxu0
    %v832 = vpop.f32.mrb[0].mxu0
    %v833 = vadd.f32 0.0, %v832
    %v834 = vpop.f32.mrb[0].mxu0
    %835 = vmatprep.mubr.bf16.mxu0 %v544
    %836 = vmatmul.mubr.bf16.gmra.mrb[0].mxu0 %v297
    %v837 = vpop.f32.mrb[0].mxu0
    %v838 = vadd.f32 0.0, %v837
    %v839 = vpop.f32.mrb[0].mxu0
    %v840 = vpop.f32.mrb[0].mxu0
    %v841 = vadd.f32 0.0, %v840
    %v842 = vpop.f32.mrb[0].mxu0
    %843 = vmatprep.mubr.bf16.mxu0 %v545
    %844 = vmatmul.mubr.bf16.gmra.mrb[0].mxu0 %v298
    %v845 = vpop.f32.mrb[0].mxu0
    %v846 = vadd.f32 0.0, %v845
    %v847 = vpop.f32.mrb[0].mxu0
    %v848 = vpop.f32.mrb[0].mxu0
    %v849 = vadd.f32 0.0, %v848
    %v850 = vpop.f32.mrb[0].mxu0
    %851 = vmatprep.mubr.bf16.mxu0 %v546
    %852 = vmatmul.mubr.bf16.gmra.mrb[0].mxu0 %v299
    %v853 = vpop.f32.mrb[0].mxu0
    %v854 = vadd.f32 0.0, %v853
    %v855 = vpop.f32.mrb[0].mxu0
    %v856 = vpop.f32.mrb[0].mxu0
    %v857 = vadd.f32 0.0, %v856
    %v858 = vpop.f32.mrb[0].mxu0
    %859 = vdwg.mxu0
    %860 = vst [vmem:[#allocation2] sm:$0xff] %v710
    %861 = vst [vmem:[#allocation2 + $0x8] sm:$0xff] %v713
    %862 = vst [vmem:[#allocation2 + $0x10] sm:$0xff] %v718
    %863 = vst [vmem:[#allocation2 + $0x18] sm:$0xff] %v721
    %864 = vst [vmem:[#allocation2 + $0x20] sm:$0xff] %v726
    %865 = vst [vmem:[#allocation2 + $0x28] sm:$0xff] %v729
    %866 = vst [vmem:[#allocation2 + $0x30] sm:$0xff] %v734
    %867 = vst [vmem:[#allocation2 + $0x38] sm:$0xff] %v737
    %868 = vst [vmem:[#allocation2 + $0x40] sm:$0xff] %v742
    %869 = vst [vmem:[#allocation2 + $0x48] sm:$0xff] %v745
    %870 = vst [vmem:[#allocation2 + $0x50] sm:$0xff] %v750
    %871 = vst [vmem:[#allocation2 + $0x58] sm:$0xff] %v753
    %872 = vst [vmem:[#allocation2 + $0x60] sm:$0xff] %v758
    %873 = vst [vmem:[#allocation2 + $0x68] sm:$0xff] %v761
    %874 = vst [vmem:[#allocation2 + $0x70] sm:$0xff] %v766
    %875 = vst [vmem:[#allocation2 + $0x78] sm:$0xff] %v769
    %876 = vst [vmem:[#allocation2 + $0x80] sm:$0xff] %v774
    %877 = vst [vmem:[#allocation2 + $0x88] sm:$0xff] %v777
    %878 = vst [vmem:[#allocation2 + $0x90] sm:$0xff] %v782
    %879 = vst [vmem:[#allocation2 + $0x98] sm:$0xff] %v785
    %880 = vst [vmem:[#allocation2 + $0xa0] sm:$0xff] %v790
    %881 = vst [vmem:[#allocation2 + $0xa8] sm:$0xff] %v793
    %882 = vst [vmem:[#allocation2 + $0xb0] sm:$0xff] %v798
    %883 = vst [vmem:[#allocation2 + $0xb8] sm:$0xff] %v801
    %884 = vst [vmem:[#allocation2 + $0xc0] sm:$0xff] %v806
    %885 = vst [vmem:[#allocation2 + $0xc8] sm:$0xff] %v809
    %886 = vst [vmem:[#allocation2 + $0xd0] sm:$0xff] %v814
    %887 = vst [vmem:[#allocation2 + $0xd8] sm:$0xff] %v817
    %888 = vst [vmem:[#allocation2 + $0xe0] sm:$0xff] %v822
    %889 = vst [vmem:[#allocation2 + $0xe8] sm:$0xff] %v825
    %890 = vst [vmem:[#allocation2 + $0xf0] sm:$0xff] %v830
    %891 = vst [vmem:[#allocation2 + $0xf8] sm:$0xff] %v833
    %892 = vst [vmem:[#allocation2 + $0x100] sm:$0xff] %v838
    %893 = vst [vmem:[#allocation2 + $0x108] sm:$0xff] %v841
    %894 = vst [vmem:[#allocation2 + $0x110] sm:$0xff] %v846
    %895 = vst [vmem:[#allocation2 + $0x118] sm:$0xff] %v849
    %896 = vst [vmem:[#allocation2 + $0x120] sm:$0xff] %v854
    %897 = vst [vmem:[#allocation2 + $0x128] sm:$0xff] %v857
    // Predicated region
    $region10: #{tpu_custom_call.1} parent=1 // pred_check
      _
    $region11: #{tpu_custom_call.1} parent=1 // pred_check_branch
      %899 = sbr.rel (0) target = $region13
    $region12: #{tpu_custom_call.1} parent=1 // pred_region
      %s901 = ssub.s32 4864, 4864
      %902 = vsyncadd [#allocation3], %s901
      %s903 = sshll.u32 [#allocation2], 4
      %s904 = int_to_ptr.vmem [resolvable:$true] %s903
      %909 = dma.vmem_to_hbm [thread:$0]  %s904, 4864, %s2, [#allocation3], 128, 128, 8
    $region13: #{tpu_custom_call.1} parent=1 // pred_fallthru
      _
    // Predicated region
    $region14: #{tpu_custom_call.1} parent=1 // pred_check
      _
    $region15: #{tpu_custom_call.1} parent=1 // pred_check_branch
      %911 = sbr.rel (0) target = $region17
    $region16: #{tpu_custom_call.1} parent=1 // pred_region
      %912 = dma.done [#allocation3], 4864
    $region17: #{tpu_custom_call.1} parent=1 // pred_fallthru
      _
    %913 = vsyncpa [#allocation3], 1

// kernel: tpu_custom_call.1
$region0: #{tpu_custom_call.1}
  #allocation0 [shape = 'u32[]', space=smem, size = 0x4, offset = 0x4, fixed_abs, tag = 'smem constant byte address 0x4 - core index']
  #allocation1 [shape = 'u32[144,128]{1,0:T(1,128)}', space=vmem, size = 0x12000, scoped, tag = 'internal scratch']
  %s0 = inlined_call_operand.vmem [shape: s32[304,2], index: 0, kind: input, shape index: {}]
  %s1 = inlined_call_operand.vmem [shape: bf16[256,128], index: 1, kind: input, shape index: {}]
  %s2 = inlined_call_operand.hbm [shape: f32[304,128], index: 2, kind: output, shape index: {}]
  %s3 = sld [smem:[#allocation0]]
  $region18: #{tpu_custom_call.1} parent=0
    _
  %s5 = ssub.s32 1, %s3
  %s6 = scalar_select 0, %s5, %s3
  $region1: #{tpu_custom_call.1} parent=0
    #allocation2 [shape = 'u8[155648]{0}', space=vmem, size = 0x26000, scoped, tag = 'output window, operand 0, single buffered']
    #allocation3 [shape = 's32[1]{0}', space=sflag, size = 0x4, scoped, tag = 'scoped memory for tpu_custom_call.1']
    %7 = vsyncpa [#allocation3], 0
    // Predicated region
    $region2: #{tpu_custom_call.1} parent=1 // pred_check
      _
    $region3: #{tpu_custom_call.1} parent=1 // pred_check_branch
      %9 = sbr.rel (0) target = $region5
    $region4: #{tpu_custom_call.1} parent=1 // pred_region
      _
    $region5: #{tpu_custom_call.1} parent=1 // pred_fallthru
      _
    // Predicated region
    $region6: #{tpu_custom_call.1} parent=1 // pred_check
      _
    $region7: #{tpu_custom_call.1} parent=1 // pred_check_branch
      %11 = sbr.rel (0) target = $region9
    $region8: #{tpu_custom_call.1} parent=1 // pred_region
      _
    $region9: #{tpu_custom_call.1} parent=1 // pred_fallthru
      _
    %v13 = vlaneseq
    %v14 = vand.u32 %v13, 127
    %v15 = vld [vmem:[%s0] sm:$0xff]
    %v16 = vld [vmem:[%s0 + $0x8] sm:$0xff]
    %v17 = vld [vmem:[%s0 + $0x10] sm:$0xff]
    %v18 = vld [vmem:[%s0 + $0x18] sm:$0xff]
    %v19 = vld [vmem:[%s0 + $0x20] sm:$0xff]
    %v20 = vld [vmem:[%s0 + $0x28] sm:$0xff]
    %v21 = vld [vmem:[%s0 + $0x30] sm:$0xff]
    %v22 = vld [vmem:[%s0 + $0x38] sm:$0xff]
    %v23 = vld [vmem:[%s0 + $0x40] sm:$0xff]
    %v24 = vld [vmem:[%s0 + $0x48] sm:$0xff]
    %v25 = vld [vmem:[%s0 + $0x50] sm:$0xff]
    %v26 = vld [vmem:[%s0 + $0x58] sm:$0xff]
    %v27 = vld [vmem:[%s0 + $0x60] sm:$0xff]
    %v28 = vld [vmem:[%s0 + $0x68] sm:$0xff]
    %v29 = vld [vmem:[%s0 + $0x70] sm:$0xff]
    %v30 = vld [vmem:[%s0 + $0x78] sm:$0xff]
    %v31 = vld [vmem:[%s0 + $0x80] sm:$0xff]
    %v32 = vld [vmem:[%s0 + $0x88] sm:$0xff]
    %v33 = vld [vmem:[%s0 + $0x90] sm:$0xff]
    %v34 = vld [vmem:[%s0 + $0x98] sm:$0xff]
    %v35 = vld [vmem:[%s0 + $0xa0] sm:$0xff]
    %v36 = vld [vmem:[%s0 + $0xa8] sm:$0xff]
    %v37 = vld [vmem:[%s0 + $0xb0] sm:$0xff]
    %v38 = vld [vmem:[%s0 + $0xb8] sm:$0xff]
    %v39 = vld [vmem:[%s0 + $0xc0] sm:$0xff]
    %v40 = vld [vmem:[%s0 + $0xc8] sm:$0xff]
    %v41 = vld [vmem:[%s0 + $0xd0] sm:$0xff]
    %v42 = vld [vmem:[%s0 + $0xd8] sm:$0xff]
    %v43 = vld [vmem:[%s0 + $0xe0] sm:$0xff]
    %v44 = vld [vmem:[%s0 + $0xe8] sm:$0xff]
    %v45 = vld [vmem:[%s0 + $0xf0] sm:$0xff]
    %v46 = vld [vmem:[%s0 + $0xf8] sm:$0xff]
    %v47 = vld [vmem:[%s0 + $0x100] sm:$0xff]
    %v48 = vld [vmem:[%s0 + $0x108] sm:$0xff]
    %v49 = vld [vmem:[%s0 + $0x110] sm:$0xff]
    %v50 = vld [vmem:[%s0 + $0x118] sm:$0xff]
    %v51 = vld [vmem:[%s0 + $0x120] sm:$0xff]
    %v52 = vld [vmem:[%s0 + $0x128] sm:$0xff]
    %53 = vset.pattern.permute.xlu0 0
    %54 = vperm.xlu0 %53, %v15
    %v55 = vpop.permute.xlu0 %54
    %56 = vset.pattern.permute.xlu0 0
    %57 = vperm.xlu0 %56, %v16
    %v58 = vpop.permute.xlu0 %57
    %59 = vset.pattern.permute.xlu0 0
    %60 = vperm.xlu0 %59, %v17
    %v61 = vpop.permute.xlu0 %60
    %62 = vset.pattern.permute.xlu0 0
    %63 = vperm.xlu0 %62, %v18
    %v64 = vpop.permute.xlu0 %63
    %65 = vset.pattern.permute.xlu0 0
    %66 = vperm.xlu0 %65, %v19
    %v67 = vpop.permute.xlu0 %66
    %68 = vset.pattern.permute.xlu0 0
    %69 = vperm.xlu0 %68, %v20
    %v70 = vpop.permute.xlu0 %69
    %71 = vset.pattern.permute.xlu0 0
    %72 = vperm.xlu0 %71, %v21
    %v73 = vpop.permute.xlu0 %72
    %74 = vset.pattern.permute.xlu0 0
    %75 = vperm.xlu0 %74, %v22
    %v76 = vpop.permute.xlu0 %75
    %77 = vset.pattern.permute.xlu0 0
    %78 = vperm.xlu0 %77, %v23
    %v79 = vpop.permute.xlu0 %78
    %80 = vset.pattern.permute.xlu0 0
    %81 = vperm.xlu0 %80, %v24
    %v82 = vpop.permute.xlu0 %81
    %83 = vset.pattern.permute.xlu0 0
    %84 = vperm.xlu0 %83, %v25
    %v85 = vpop.permute.xlu0 %84
    %86 = vset.pattern.permute.xlu0 0
    %87 = vperm.xlu0 %86, %v26
    %v88 = vpop.permute.xlu0 %87
    %89 = vset.pattern.permute.xlu0 0
    %90 = vperm.xlu0 %89, %v27
    %v91 = vpop.permute.xlu0 %90
    %92 = vset.pattern.permute.xlu0 0
    %93 = vperm.xlu0 %92, %v28
    %v94 = vpop.permute.xlu0 %93
    %95 = vset.pattern.permute.xlu0 0
    %96 = vperm.xlu0 %95, %v29
    %v97 = vpop.permute.xlu0 %96
    %98 = vset.pattern.permute.xlu0 0
    %99 = vperm.xlu0 %98, %v30
    %v100 = vpop.permute.xlu0 %99
    %101 = vset.pattern.permute.xlu0 0
    %102 = vperm.xlu0 %101, %v31
    %v103 = vpop.permute.xlu0 %102
    %104 = vset.pattern.permute.xlu0 0
    %105 = vperm.xlu0 %104, %v32
    %v106 = vpop.permute.xlu0 %105
    %107 = vset.pattern.permute.xlu0 0
    %108 = vperm.xlu0 %107, %v33
    %v109 = vpop.permute.xlu0 %108
    %110 = vset.pattern.permute.xlu0 0
    %111 = vperm.xlu0 %110, %v34
    %v112 = vpop.permute.xlu0 %111
    %113 = vset.pattern.permute.xlu0 0
    %114 = vperm.xlu0 %113, %v35
    %v115 = vpop.permute.xlu0 %114
    %116 = vset.pattern.permute.xlu0 0
    %117 = vperm.xlu0 %116, %v36
    %v118 = vpop.permute.xlu0 %117
    %119 = vset.pattern.permute.xlu0 0
    %120 = vperm.xlu0 %119, %v37
    %v121 = vpop.permute.xlu0 %120
    %122 = vset.pattern.permute.xlu0 0
    %123 = vperm.xlu0 %122, %v38
    %v124 = vpop.permute.xlu0 %123
    %125 = vset.pattern.permute.xlu0 0
    %126 = vperm.xlu0 %125, %v39
    %v127 = vpop.permute.xlu0 %126
    %128 = vset.pattern.permute.xlu0 0
    %129 = vperm.xlu0 %128, %v40
    %v130 = vpop.permute.xlu0 %129
    %131 = vset.pattern.permute.xlu0 0
    %132 = vperm.xlu0 %131, %v41
    %v133 = vpop.permute.xlu0 %132
    %134 = vset.pattern.permute.xlu0 0
    %135 = vperm.xlu0 %134, %v42
    %v136 = vpop.permute.xlu0 %135
    %137 = vset.pattern.permute.xlu0 0
    %138 = vperm.xlu0 %137, %v43
    %v139 = vpop.permute.xlu0 %138
    %140 = vset.pattern.permute.xlu0 0
    %141 = vperm.xlu0 %140, %v44
    %v142 = vpop.permute.xlu0 %141
    %143 = vset.pattern.permute.xlu0 0
    %144 = vperm.xlu0 %143, %v45
    %v145 = vpop.permute.xlu0 %144
    %146 = vset.pattern.permute.xlu0 0
    %147 = vperm.xlu0 %146, %v46
    %v148 = vpop.permute.xlu0 %147
    %149 = vset.pattern.permute.xlu0 0
    %150 = vperm.xlu0 %149, %v47
    %v151 = vpop.permute.xlu0 %150
    %152 = vset.pattern.permute.xlu0 0
    %153 = vperm.xlu0 %152, %v48
    %v154 = vpop.permute.xlu0 %153
    %155 = vset.pattern.permute.xlu0 0
    %156 = vperm.xlu0 %155, %v49
    %v157 = vpop.permute.xlu0 %156
    %158 = vset.pattern.permute.xlu0 0
    %159 = vperm.xlu0 %158, %v50
    %v160 = vpop.permute.xlu0 %159
    %161 = vset.pattern.permute.xlu0 0
    %162 = vperm.xlu0 %161, %v51
    %v163 = vpop.permute.xlu0 %162
    %164 = vset.pattern.permute.xlu0 0
    %165 = vperm.xlu0 %164, %v52
    %v166 = vpop.permute.xlu0 %165
    %vm167 = vcmp.eq.s32.totalorder %v55, %v14
    %vm168 = vcmp.eq.s32.totalorder %v58, %v14
    %vm169 = vcmp.eq.s32.totalorder %v61, %v14
    %vm170 = vcmp.eq.s32.totalorder %v64, %v14
    %vm171 = vcmp.eq.s32.totalorder %v67, %v14
    %vm172 = vcmp.eq.s32.totalorder %v70, %v14
    %vm173 = vcmp.eq.s32.totalorder %v73, %v14
    %vm174 = vcmp.eq.s32.totalorder %v76, %v14
    %vm175 = vcmp.eq.s32.totalorder %v79, %v14
    %vm176 = vcmp.eq.s32.totalorder %v82, %v14
    %vm177 = vcmp.eq.s32.totalorder %v85, %v14
    %vm178 = vcmp.eq.s32.totalorder %v88, %v14
    %vm179 = vcmp.eq.s32.totalorder %v91, %v14
    %vm180 = vcmp.eq.s32.totalorder %v94, %v14
    %vm181 = vcmp.eq.s32.totalorder %v97, %v14
    %vm182 = vcmp.eq.s32.totalorder %v100, %v14
    %vm183 = vcmp.eq.s32.totalorder %v103, %v14
    %vm184 = vcmp.eq.s32.totalorder %v106, %v14
    %vm185 = vcmp.eq.s32.totalorder %v109, %v14
    %vm186 = vcmp.eq.s32.totalorder %v112, %v14
    %vm187 = vcmp.eq.s32.totalorder %v115, %v14
    %vm188 = vcmp.eq.s32.totalorder %v118, %v14
    %vm189 = vcmp.eq.s32.totalorder %v121, %v14
    %vm190 = vcmp.eq.s32.totalorder %v124, %v14
    %vm191 = vcmp.eq.s32.totalorder %v127, %v14
    %vm192 = vcmp.eq.s32.totalorder %v130, %v14
    %vm193 = vcmp.eq.s32.totalorder %v133, %v14
    %vm194 = vcmp.eq.s32.totalorder %v136, %v14
    %vm195 = vcmp.eq.s32.totalorder %v139, %v14
    %vm196 = vcmp.eq.s32.totalorder %v142, %v14
    %vm197 = vcmp.eq.s32.totalorder %v145, %v14
    %vm198 = vcmp.eq.s32.totalorder %v148, %v14
    %vm199 = vcmp.eq.s32.totalorder %v151, %v14
    %vm200 = vcmp.eq.s32.totalorder %v154, %v14
    %vm201 = vcmp.eq.s32.totalorder %v157, %v14
    %vm202 = vcmp.eq.s32.totalorder %v160, %v14
    %vm203 = vcmp.eq.s32.totalorder %v163, %v14
    %vm204 = vcmp.eq.s32.totalorder %v166, %v14
    %v205 = vsel %vm167, 1, 0
    %v206 = vsel %vm168, 1, 0
    %v207 = vsel %vm169, 1, 0
    %v208 = vsel %vm170, 1, 0
    %v209 = vsel %vm171, 1, 0
    %v210 = vsel %vm172, 1, 0
    %v211 = vsel %vm173, 1, 0
    %v212 = vsel %vm174, 1, 0
    %v213 = vsel %vm175, 1, 0
    %v214 = vsel %vm176, 1, 0
    %v215 = vsel %vm177, 1, 0
    %v216 = vsel %vm178, 1, 0
    %v217 = vsel %vm179, 1, 0
    %v218 = vsel %vm180, 1, 0
    %v219 = vsel %vm181, 1, 0
    %v220 = vsel %vm182, 1, 0
    %v221 = vsel %vm183, 1, 0
    %v222 = vsel %vm184, 1, 0
    %v223 = vsel %vm185, 1, 0
    %v224 = vsel %vm186, 1, 0
    %v225 = vsel %vm187, 1, 0
    %v226 = vsel %vm188, 1, 0
    %v227 = vsel %vm189, 1, 0
    %v228 = vsel %vm190, 1, 0
    %v229 = vsel %vm191, 1, 0
    %v230 = vsel %vm192, 1, 0
    %v231 = vsel %vm193, 1, 0
    %v232 = vsel %vm194, 1, 0
    %v233 = vsel %vm195, 1, 0
    %v234 = vsel %vm196, 1, 0
    %v235 = vsel %vm197, 1, 0
    %v236 = vsel %vm198, 1, 0
    %v237 = vsel %vm199, 1, 0
    %v238 = vsel %vm200, 1, 0
    %v239 = vsel %vm201, 1, 0
    %v240 = vsel %vm202, 1, 0
    %v241 = vsel %vm203, 1, 0
    %v242 = vsel %vm204, 1, 0
    %v243 = vcvt.s32.f32 %v205
    %v244 = vcvt.s32.f32 %v206
    %v245 = vcvt.s32.f32 %v207
    %v246 = vcvt.s32.f32 %v208
    %v247 = vcvt.s32.f32 %v209
    %v248 = vcvt.s32.f32 %v210
    %v249 = vcvt.s32.f32 %v211
    %v250 = vcvt.s32.f32 %v212
    %v251 = vcvt.s32.f32 %v213
    %v252 = vcvt.s32.f32 %v214
    %v253 = vcvt.s32.f32 %v215
    %v254 = vcvt.s32.f32 %v216
    %v255 = vcvt.s32.f32 %v217
    %v256 = vcvt.s32.f32 %v218
    %v257 = vcvt.s32.f32 %v219
    %v258 = vcvt.s32.f32 %v220
    %v259 = vcvt.s32.f32 %v221
    %v260 = vcvt.s32.f32 %v222
    %v261 = vcvt.s32.f32 %v223
    %v262 = vcvt.s32.f32 %v224
    %v263 = vcvt.s32.f32 %v225
    %v264 = vcvt.s32.f32 %v226
    %v265 = vcvt.s32.f32 %v227
    %v266 = vcvt.s32.f32 %v228
    %v267 = vcvt.s32.f32 %v229
    %v268 = vcvt.s32.f32 %v230
    %v269 = vcvt.s32.f32 %v231
    %v270 = vcvt.s32.f32 %v232
    %v271 = vcvt.s32.f32 %v233
    %v272 = vcvt.s32.f32 %v234
    %v273 = vcvt.s32.f32 %v235
    %v274 = vcvt.s32.f32 %v236
    %v275 = vcvt.s32.f32 %v237
    %v276 = vcvt.s32.f32 %v238
    %v277 = vcvt.s32.f32 %v239
    %v278 = vcvt.s32.f32 %v240
    %v279 = vcvt.s32.f32 %v241
    %v280 = vcvt.s32.f32 %v242
    %v281 = vpack.c.bf16 %v244, %v243
    %v282 = vpack.c.bf16 %v246, %v245
    %v283 = vpack.c.bf16 %v248, %v247
    %v284 = vpack.c.bf16 %v250, %v249
    %v285 = vpack.c.bf16 %v252, %v251
    %v286 = vpack.c.bf16 %v254, %v253
    %v287 = vpack.c.bf16 %v256, %v255
    %v288 = vpack.c.bf16 %v258, %v257
    %v289 = vpack.c.bf16 %v260, %v259
    %v290 = vpack.c.bf16 %v262, %v261
    %v291 = vpack.c.bf16 %v264, %v263
    %v292 = vpack.c.bf16 %v266, %v265
    %v293 = vpack.c.bf16 %v268, %v267
    %v294 = vpack.c.bf16 %v270, %v269
    %v295 = vpack.c.bf16 %v272, %v271
    %v296 = vpack.c.bf16 %v274, %v273
    %v297 = vpack.c.bf16 %v276, %v275
    %v298 = vpack.c.bf16 %v278, %v277
    %v299 = vpack.c.bf16 %v280, %v279
    %300 = vset.pattern.permute.xlu0 1
    %301 = vperm.xlu0 %300, %v15
    %v302 = vpop.permute.xlu0 %301
    %303 = vset.pattern.permute.xlu0 1
    %304 = vperm.xlu0 %303, %v16
    %v305 = vpop.permute.xlu0 %304
    %306 = vset.pattern.permute.xlu0 1
    %307 = vperm.xlu0 %306, %v17
    %v308 = vpop.permute.xlu0 %307
    %309 = vset.pattern.permute.xlu0 1
    %310 = vperm.xlu0 %309, %v18
    %v311 = vpop.permute.xlu0 %310
    %312 = vset.pattern.permute.xlu0 1
    %313 = vperm.xlu0 %312, %v19
    %v314 = vpop.permute.xlu0 %313
    %315 = vset.pattern.permute.xlu0 1
    %316 = vperm.xlu0 %315, %v20
    %v317 = vpop.permute.xlu0 %316
    %318 = vset.pattern.permute.xlu0 1
    %319 = vperm.xlu0 %318, %v21
    %v320 = vpop.permute.xlu0 %319
    %321 = vset.pattern.permute.xlu0 1
    %322 = vperm.xlu0 %321, %v22
    %v323 = vpop.permute.xlu0 %322
    %324 = vset.pattern.permute.xlu0 1
    %325 = vperm.xlu0 %324, %v23
    %v326 = vpop.permute.xlu0 %325
    %327 = vset.pattern.permute.xlu0 1
    %328 = vperm.xlu0 %327, %v24
    %v329 = vpop.permute.xlu0 %328
    %330 = vset.pattern.permute.xlu0 1
    %331 = vperm.xlu0 %330, %v25
    %v332 = vpop.permute.xlu0 %331
    %333 = vset.pattern.permute.xlu0 1
    %334 = vperm.xlu0 %333, %v26
    %v335 = vpop.permute.xlu0 %334
    %336 = vset.pattern.permute.xlu0 1
    %337 = vperm.xlu0 %336, %v27
    %v338 = vpop.permute.xlu0 %337
    %339 = vset.pattern.permute.xlu0 1
    %340 = vperm.xlu0 %339, %v28
    %v341 = vpop.permute.xlu0 %340
    %342 = vset.pattern.permute.xlu0 1
    %343 = vperm.xlu0 %342, %v29
    %v344 = vpop.permute.xlu0 %343
    %345 = vset.pattern.permute.xlu0 1
    %346 = vperm.xlu0 %345, %v30
    %v347 = vpop.permute.xlu0 %346
    %348 = vset.pattern.permute.xlu0 1
    %349 = vperm.xlu0 %348, %v31
    %v350 = vpop.permute.xlu0 %349
    %351 = vset.pattern.permute.xlu0 1
    %352 = vperm.xlu0 %351, %v32
    %v353 = vpop.permute.xlu0 %352
    %354 = vset.pattern.permute.xlu0 1
    %355 = vperm.xlu0 %354, %v33
    %v356 = vpop.permute.xlu0 %355
    %357 = vset.pattern.permute.xlu0 1
    %358 = vperm.xlu0 %357, %v34
    %v359 = vpop.permute.xlu0 %358
    %360 = vset.pattern.permute.xlu0 1
    %361 = vperm.xlu0 %360, %v35
    %v362 = vpop.permute.xlu0 %361
    %363 = vset.pattern.permute.xlu0 1
    %364 = vperm.xlu0 %363, %v36
    %v365 = vpop.permute.xlu0 %364
    %366 = vset.pattern.permute.xlu0 1
    %367 = vperm.xlu0 %366, %v37
    %v368 = vpop.permute.xlu0 %367
    %369 = vset.pattern.permute.xlu0 1
    %370 = vperm.xlu0 %369, %v38
    %v371 = vpop.permute.xlu0 %370
    %372 = vset.pattern.permute.xlu0 1
    %373 = vperm.xlu0 %372, %v39
    %v374 = vpop.permute.xlu0 %373
    %375 = vset.pattern.permute.xlu0 1
    %376 = vperm.xlu0 %375, %v40
    %v377 = vpop.permute.xlu0 %376
    %378 = vset.pattern.permute.xlu0 1
    %379 = vperm.xlu0 %378, %v41
    %v380 = vpop.permute.xlu0 %379
    %381 = vset.pattern.permute.xlu0 1
    %382 = vperm.xlu0 %381, %v42
    %v383 = vpop.permute.xlu0 %382
    %384 = vset.pattern.permute.xlu0 1
    %385 = vperm.xlu0 %384, %v43
    %v386 = vpop.permute.xlu0 %385
    %387 = vset.pattern.permute.xlu0 1
    %388 = vperm.xlu0 %387, %v44
    %v389 = vpop.permute.xlu0 %388
    %390 = vset.pattern.permute.xlu0 1
    %391 = vperm.xlu0 %390, %v45
    %v392 = vpop.permute.xlu0 %391
    %393 = vset.pattern.permute.xlu0 1
    %394 = vperm.xlu0 %393, %v46
    %v395 = vpop.permute.xlu0 %394
    %396 = vset.pattern.permute.xlu0 1
    %397 = vperm.xlu0 %396, %v47
    %v398 = vpop.permute.xlu0 %397
    %399 = vset.pattern.permute.xlu0 1
    %400 = vperm.xlu0 %399, %v48
    %v401 = vpop.permute.xlu0 %400
    %402 = vset.pattern.permute.xlu0 1
    %403 = vperm.xlu0 %402, %v49
    %v404 = vpop.permute.xlu0 %403
    %405 = vset.pattern.permute.xlu0 1
    %406 = vperm.xlu0 %405, %v50
    %v407 = vpop.permute.xlu0 %406
    %408 = vset.pattern.permute.xlu0 1
    %409 = vperm.xlu0 %408, %v51
    %v410 = vpop.permute.xlu0 %409
    %411 = vset.pattern.permute.xlu0 1
    %412 = vperm.xlu0 %411, %v52
    %v413 = vpop.permute.xlu0 %412
    %vm414 = vcmp.eq.s32.totalorder %v302, %v14
    %vm415 = vcmp.eq.s32.totalorder %v305, %v14
    %vm416 = vcmp.eq.s32.totalorder %v308, %v14
    %vm417 = vcmp.eq.s32.totalorder %v311, %v14
    %vm418 = vcmp.eq.s32.totalorder %v314, %v14
    %vm419 = vcmp.eq.s32.totalorder %v317, %v14
    %vm420 = vcmp.eq.s32.totalorder %v320, %v14
    %vm421 = vcmp.eq.s32.totalorder %v323, %v14
    %vm422 = vcmp.eq.s32.totalorder %v326, %v14
    %vm423 = vcmp.eq.s32.totalorder %v329, %v14
    %vm424 = vcmp.eq.s32.totalorder %v332, %v14
    %vm425 = vcmp.eq.s32.totalorder %v335, %v14
    %vm426 = vcmp.eq.s32.totalorder %v338, %v14
    %vm427 = vcmp.eq.s32.totalorder %v341, %v14
    %vm428 = vcmp.eq.s32.totalorder %v344, %v14
    %vm429 = vcmp.eq.s32.totalorder %v347, %v14
    %vm430 = vcmp.eq.s32.totalorder %v350, %v14
    %vm431 = vcmp.eq.s32.totalorder %v353, %v14
    %vm432 = vcmp.eq.s32.totalorder %v356, %v14
    %vm433 = vcmp.eq.s32.totalorder %v359, %v14
    %vm434 = vcmp.eq.s32.totalorder %v362, %v14
    %vm435 = vcmp.eq.s32.totalorder %v365, %v14
    %vm436 = vcmp.eq.s32.totalorder %v368, %v14
    %vm437 = vcmp.eq.s32.totalorder %v371, %v14
    %vm438 = vcmp.eq.s32.totalorder %v374, %v14
    %vm439 = vcmp.eq.s32.totalorder %v377, %v14
    %vm440 = vcmp.eq.s32.totalorder %v380, %v14
    %vm441 = vcmp.eq.s32.totalorder %v383, %v14
    %vm442 = vcmp.eq.s32.totalorder %v386, %v14
    %vm443 = vcmp.eq.s32.totalorder %v389, %v14
    %vm444 = vcmp.eq.s32.totalorder %v392, %v14
    %vm445 = vcmp.eq.s32.totalorder %v395, %v14
    %vm446 = vcmp.eq.s32.totalorder %v398, %v14
    %vm447 = vcmp.eq.s32.totalorder %v401, %v14
    %vm448 = vcmp.eq.s32.totalorder %v404, %v14
    %vm449 = vcmp.eq.s32.totalorder %v407, %v14
    %vm450 = vcmp.eq.s32.totalorder %v410, %v14
    %vm451 = vcmp.eq.s32.totalorder %v413, %v14
    %v452 = vsel %vm414, 1, 0
    %v453 = vsel %vm415, 1, 0
    %v454 = vsel %vm416, 1, 0
    %v455 = vsel %vm417, 1, 0
    %v456 = vsel %vm418, 1, 0
    %v457 = vsel %vm419, 1, 0
    %v458 = vsel %vm420, 1, 0
    %v459 = vsel %vm421, 1, 0
    %v460 = vsel %vm422, 1, 0
    %v461 = vsel %vm423, 1, 0
    %v462 = vsel %vm424, 1, 0
    %v463 = vsel %vm425, 1, 0
    %v464 = vsel %vm426, 1, 0
    %v465 = vsel %vm427, 1, 0
    %v466 = vsel %vm428, 1, 0
    %v467 = vsel %vm429, 1, 0
    %v468 = vsel %vm430, 1, 0
    %v469 = vsel %vm431, 1, 0
    %v470 = vsel %vm432, 1, 0
    %v471 = vsel %vm433, 1, 0
    %v472 = vsel %vm434, 1, 0
    %v473 = vsel %vm435, 1, 0
    %v474 = vsel %vm436, 1, 0
    %v475 = vsel %vm437, 1, 0
    %v476 = vsel %vm438, 1, 0
    %v477 = vsel %vm439, 1, 0
    %v478 = vsel %vm440, 1, 0
    %v479 = vsel %vm441, 1, 0
    %v480 = vsel %vm442, 1, 0
    %v481 = vsel %vm443, 1, 0
    %v482 = vsel %vm444, 1, 0
    %v483 = vsel %vm445, 1, 0
    %v484 = vsel %vm446, 1, 0
    %v485 = vsel %vm447, 1, 0
    %v486 = vsel %vm448, 1, 0
    %v487 = vsel %vm449, 1, 0
    %v488 = vsel %vm450, 1, 0
    %v489 = vsel %vm451, 1, 0
    %v490 = vcvt.s32.f32 %v452
    %v491 = vcvt.s32.f32 %v453
    %v492 = vcvt.s32.f32 %v454
    %v493 = vcvt.s32.f32 %v455
    %v494 = vcvt.s32.f32 %v456
    %v495 = vcvt.s32.f32 %v457
    %v496 = vcvt.s32.f32 %v458
    %v497 = vcvt.s32.f32 %v459
    %v498 = vcvt.s32.f32 %v460
    %v499 = vcvt.s32.f32 %v461
    %v500 = vcvt.s32.f32 %v462
    %v501 = vcvt.s32.f32 %v463
    %v502 = vcvt.s32.f32 %v464
    %v503 = vcvt.s32.f32 %v465
    %v504 = vcvt.s32.f32 %v466
    %v505 = vcvt.s32.f32 %v467
    %v506 = vcvt.s32.f32 %v468
    %v507 = vcvt.s32.f32 %v469
    %v508 = vcvt.s32.f32 %v470
    %v509 = vcvt.s32.f32 %v471
    %v510 = vcvt.s32.f32 %v472
    %v511 = vcvt.s32.f32 %v473
    %v512 = vcvt.s32.f32 %v474
    %v513 = vcvt.s32.f32 %v475
    %v514 = vcvt.s32.f32 %v476
    %v515 = vcvt.s32.f32 %v477
    %v516 = vcvt.s32.f32 %v478
    %v517 = vcvt.s32.f32 %v479
    %v518 = vcvt.s32.f32 %v480
    %v519 = vcvt.s32.f32 %v481
    %v520 = vcvt.s32.f32 %v482
    %v521 = vcvt.s32.f32 %v483
    %v522 = vcvt.s32.f32 %v484
    %v523 = vcvt.s32.f32 %v485
    %v524 = vcvt.s32.f32 %v486
    %v525 = vcvt.s32.f32 %v487
    %v526 = vcvt.s32.f32 %v488
    %v527 = vcvt.s32.f32 %v489
    %v528 = vpack.c.bf16 %v491, %v490
    %v529 = vpack.c.bf16 %v493, %v492
    %v530 = vpack.c.bf16 %v495, %v494
    %v531 = vpack.c.bf16 %v497, %v496
    %v532 = vpack.c.bf16 %v499, %v498
    %v533 = vpack.c.bf16 %v501, %v500
    %v534 = vpack.c.bf16 %v503, %v502
    %v535 = vpack.c.bf16 %v505, %v504
    %v536 = vpack.c.bf16 %v507, %v506
    %v537 = vpack.c.bf16 %v509, %v508
    %v538 = vpack.c.bf16 %v511, %v510
    %v539 = vpack.c.bf16 %v513, %v512
    %v540 = vpack.c.bf16 %v515, %v514
    %v541 = vpack.c.bf16 %v517, %v516
    %v542 = vpack.c.bf16 %v519, %v518
    %v543 = vpack.c.bf16 %v521, %v520
    %v544 = vpack.c.bf16 %v523, %v522
    %v545 = vpack.c.bf16 %v525, %v524
    %v546 = vpack.c.bf16 %v527, %v526
    %v547 = vld [vmem:[%s1] sm:$0xf]
    %v548 = vld [vmem:[%s1 + $0x4] sm:$0xf]
    %v549 = vld [vmem:[%s1 + $0x8] sm:$0xf]
    %v550 = vld [vmem:[%s1 + $0xc] sm:$0xf]
    %v551 = vld [vmem:[%s1 + $0x10] sm:$0xf]
    %v552 = vld [vmem:[%s1 + $0x14] sm:$0xf]
    %v553 = vld [vmem:[%s1 + $0x18] sm:$0xf]
    %v554 = vld [vmem:[%s1 + $0x1c] sm:$0xf]
    %v555 = vld [vmem:[%s1 + $0x20] sm:$0xf]
    %v556 = vld [vmem:[%s1 + $0x24] sm:$0xf]
    %v557 = vld [vmem:[%s1 + $0x28] sm:$0xf]
    %v558 = vld [vmem:[%s1 + $0x2c] sm:$0xf]
    %v559 = vld [vmem:[%s1 + $0x30] sm:$0xf]
    %v560 = vld [vmem:[%s1 + $0x34] sm:$0xf]
    %v561 = vld [vmem:[%s1 + $0x38] sm:$0xf]
    %v562 = vld [vmem:[%s1 + $0x3c] sm:$0xf]
    %v563 = vld [vmem:[%s1 + $0x40] sm:$0xf]
    %v564 = vld [vmem:[%s1 + $0x44] sm:$0xf]
    %v565 = vld [vmem:[%s1 + $0x48] sm:$0xf]
    %v566 = vld [vmem:[%s1 + $0x4c] sm:$0xf]
    %v567 = vld [vmem:[%s1 + $0x50] sm:$0xf]
    %v568 = vld [vmem:[%s1 + $0x54] sm:$0xf]
    %v569 = vld [vmem:[%s1 + $0x58] sm:$0xf]
    %v570 = vld [vmem:[%s1 + $0x5c] sm:$0xf]
    %v571 = vld [vmem:[%s1 + $0x60] sm:$0xf]
    %v572 = vld [vmem:[%s1 + $0x64] sm:$0xf]
    %v573 = vld [vmem:[%s1 + $0x68] sm:$0xf]
    %v574 = vld [vmem:[%s1 + $0x6c] sm:$0xf]
    %v575 = vld [vmem:[%s1 + $0x70] sm:$0xf]
    %v576 = vld [vmem:[%s1 + $0x74] sm:$0xf]
    %v577 = vld [vmem:[%s1 + $0x78] sm:$0xf]
    %v578 = vld [vmem:[%s1 + $0x7c] sm:$0xf]
    %v611 = vunpack.c.l.b16 %v547
    %v612 = vunpack.c.l.b16 %v548
    %v613 = vunpack.c.l.b16 %v549
    %v614 = vunpack.c.l.b16 %v550
    %v615 = vunpack.c.l.b16 %v551
    %v616 = vunpack.c.l.b16 %v552
    %v617 = vunpack.c.l.b16 %v553
    %v618 = vunpack.c.l.b16 %v554
    %v619 = vunpack.c.l.b16 %v555
    %v620 = vunpack.c.l.b16 %v556
    %v621 = vunpack.c.l.b16 %v557
    %v622 = vunpack.c.l.b16 %v558
    %v623 = vunpack.c.l.b16 %v559
    %v624 = vunpack.c.l.b16 %v560
    %v625 = vunpack.c.l.b16 %v561
    %v626 = vunpack.c.l.b16 %v562
    %v627 = vunpack.c.l.b16 %v563
    %v628 = vunpack.c.l.b16 %v564
    %v629 = vunpack.c.l.b16 %v565
    %v630 = vunpack.c.l.b16 %v566
    %v631 = vunpack.c.l.b16 %v567
    %v632 = vunpack.c.l.b16 %v568
    %v633 = vunpack.c.l.b16 %v569
    %v634 = vunpack.c.l.b16 %v570
    %v635 = vunpack.c.l.b16 %v571
    %v636 = vunpack.c.l.b16 %v572
    %v637 = vunpack.c.l.b16 %v573
    %v638 = vunpack.c.l.b16 %v574
    %v639 = vunpack.c.l.b16 %v575
    %v640 = vunpack.c.l.b16 %v576
    %v641 = vunpack.c.l.b16 %v577
    %v642 = vunpack.c.l.b16 %v578
    %v643 = vpack.c.b16 %v612, %v611
    %v644 = vpack.c.b16 %v614, %v613
    %v645 = vpack.c.b16 %v616, %v615
    %v646 = vpack.c.b16 %v618, %v617
    %v647 = vpack.c.b16 %v620, %v619
    %v648 = vpack.c.b16 %v622, %v621
    %v649 = vpack.c.b16 %v624, %v623
    %v650 = vpack.c.b16 %v626, %v625
    %v651 = vpack.c.b16 %v628, %v627
    %v652 = vpack.c.b16 %v630, %v629
    %v653 = vpack.c.b16 %v632, %v631
    %v654 = vpack.c.b16 %v634, %v633
    %v655 = vpack.c.b16 %v636, %v635
    %v656 = vpack.c.b16 %v638, %v637
    %v657 = vpack.c.b16 %v640, %v639
    %v658 = vpack.c.b16 %v642, %v641
    %675 = vmatprep.subr.bf16.mxu0 0
    %676 = vmatpush1.bf16.msra.mxu0 %v643
    %677 = vmatprep.subr.bf16.mxu0 0
    %678 = vmatpush1.bf16.msra.mxu0 %v644
    %679 = vmatprep.subr.bf16.mxu0 0
    %680 = vmatpush1.bf16.msra.mxu0 %v645
    %681 = vmatprep.subr.bf16.mxu0 0
    %682 = vmatpush1.bf16.msra.mxu0 %v646
    %683 = vmatprep.subr.bf16.mxu0 0
    %684 = vmatpush1.bf16.msra.mxu0 %v647
    %685 = vmatprep.subr.bf16.mxu0 0
    %686 = vmatpush1.bf16.msra.mxu0 %v648
    %687 = vmatprep.subr.bf16.mxu0 0
    %688 = vmatpush1.bf16.msra.mxu0 %v649
    %689 = vmatprep.subr.bf16.mxu0 0
    %690 = vmatpush1.bf16.msra.mxu0 %v650
    %691 = vmatprep.subr.bf16.mxu0 0
    %692 = vmatpush1.bf16.msra.mxu0 %v651
    %693 = vmatprep.subr.bf16.mxu0 0
    %694 = vmatpush1.bf16.msra.mxu0 %v652
    %695 = vmatprep.subr.bf16.mxu0 0
    %696 = vmatpush1.bf16.msra.mxu0 %v653
    %697 = vmatprep.subr.bf16.mxu0 0
    %698 = vmatpush1.bf16.msra.mxu0 %v654
    %699 = vmatprep.subr.bf16.mxu0 0
    %700 = vmatpush1.bf16.msra.mxu0 %v655
    %701 = vmatprep.subr.bf16.mxu0 0
    %702 = vmatpush1.bf16.msra.mxu0 %v656
    %703 = vmatprep.subr.bf16.mxu0 0
    %704 = vmatpush1.bf16.msra.mxu0 %v657
    %705 = vmatprep.subr.bf16.mxu0 0
    %706 = vmatpush1.bf16.msra.mxu0 %v658
    %707 = vmatprep.mubr.bf16.mxu0 %v528
    %708 = vmatmul.mubr.bf16.gmra.mrb[0].mxu0 %v281
    %v709 = vpop.f32.mrb[0].mxu0
    %v710 = vadd.f32 0.0, %v709
    %v711 = vpop.f32.mrb[0].mxu0
    %v712 = vpop.f32.mrb[0].mxu0
    %v713 = vadd.f32 0.0, %v712
    %v714 = vpop.f32.mrb[0].mxu0
    %715 = vmatprep.mubr.bf16.mxu0 %v529
    %716 = vmatmul.mubr.bf16.gmra.mrb[0].mxu0 %v282
    %v717 = vpop.f32.mrb[0].mxu0
    %v718 = vadd.f32 0.0, %v717
    %v719 = vpop.f32.mrb[0].mxu0
    %v720 = vpop.f32.mrb[0].mxu0
    %v721 = vadd.f32 0.0, %v720
    %v722 = vpop.f32.mrb[0].mxu0
    %723 = vmatprep.mubr.bf16.mxu0 %v530
    %724 = vmatmul.mubr.bf16.gmra.mrb[0].mxu0 %v283
    %v725 = vpop.f32.mrb[0].mxu0
    %v726 = vadd.f32 0.0, %v725
    %v727 = vpop.f32.mrb[0].mxu0
    %v728 = vpop.f32.mrb[0].mxu0
    %v729 = vadd.f32 0.0, %v728
    %v730 = vpop.f32.mrb[0].mxu0
    %731 = vmatprep.mubr.bf16.mxu0 %v531
    %732 = vmatmul.mubr.bf16.gmra.mrb[0].mxu0 %v284
    %v733 = vpop.f32.mrb[0].mxu0
    %v734 = vadd.f32 0.0, %v733
    %v735 = vpop.f32.mrb[0].mxu0
    %v736 = vpop.f32.mrb[0].mxu0
    %v737 = vadd.f32 0.0, %v736
    %v738 = vpop.f32.mrb[0].mxu0
    %739 = vmatprep.mubr.bf16.mxu0 %v532
    %740 = vmatmul.mubr.bf16.gmra.mrb[0].mxu0 %v285
    %v741 = vpop.f32.mrb[0].mxu0
    %v742 = vadd.f32 0.0, %v741
    %v743 = vpop.f32.mrb[0].mxu0
    %v744 = vpop.f32.mrb[0].mxu0
    %v745 = vadd.f32 0.0, %v744
    %v746 = vpop.f32.mrb[0].mxu0
    %747 = vmatprep.mubr.bf16.mxu0 %v533
    %748 = vmatmul.mubr.bf16.gmra.mrb[0].mxu0 %v286
    %v749 = vpop.f32.mrb[0].mxu0
    %v750 = vadd.f32 0.0, %v749
    %v751 = vpop.f32.mrb[0].mxu0
    %v752 = vpop.f32.mrb[0].mxu0
    %v753 = vadd.f32 0.0, %v752
    %v754 = vpop.f32.mrb[0].mxu0
    %755 = vmatprep.mubr.bf16.mxu0 %v534
    %756 = vmatmul.mubr.bf16.gmra.mrb[0].mxu0 %v287
    %v757 = vpop.f32.mrb[0].mxu0
    %v758 = vadd.f32 0.0, %v757
    %v759 = vpop.f32.mrb[0].mxu0
    %v760 = vpop.f32.mrb[0].mxu0
    %v761 = vadd.f32 0.0, %v760
    %v762 = vpop.f32.mrb[0].mxu0
    %763 = vmatprep.mubr.bf16.mxu0 %v535
    %764 = vmatmul.mubr.bf16.gmra.mrb[0].mxu0 %v288
    %v765 = vpop.f32.mrb[0].mxu0
    %v766 = vadd.f32 0.0, %v765
    %v767 = vpop.f32.mrb[0].mxu0
    %v768 = vpop.f32.mrb[0].mxu0
    %v769 = vadd.f32 0.0, %v768
    %v770 = vpop.f32.mrb[0].mxu0
    %771 = vmatprep.mubr.bf16.mxu0 %v536
    %772 = vmatmul.mubr.bf16.gmra.mrb[0].mxu0 %v289
    %v773 = vpop.f32.mrb[0].mxu0
    %v774 = vadd.f32 0.0, %v773
    %v775 = vpop.f32.mrb[0].mxu0
    %v776 = vpop.f32.mrb[0].mxu0
    %v777 = vadd.f32 0.0, %v776
    %v778 = vpop.f32.mrb[0].mxu0
    %779 = vmatprep.mubr.bf16.mxu0 %v537
    %780 = vmatmul.mubr.bf16.gmra.mrb[0].mxu0 %v290
    %v781 = vpop.f32.mrb[0].mxu0
    %v782 = vadd.f32 0.0, %v781
    %v783 = vpop.f32.mrb[0].mxu0
    %v784 = vpop.f32.mrb[0].mxu0
    %v785 = vadd.f32 0.0, %v784
    %v786 = vpop.f32.mrb[0].mxu0
    %787 = vmatprep.mubr.bf16.mxu0 %v538
    %788 = vmatmul.mubr.bf16.gmra.mrb[0].mxu0 %v291
    %v789 = vpop.f32.mrb[0].mxu0
    %v790 = vadd.f32 0.0, %v789
    %v791 = vpop.f32.mrb[0].mxu0
    %v792 = vpop.f32.mrb[0].mxu0
    %v793 = vadd.f32 0.0, %v792
    %v794 = vpop.f32.mrb[0].mxu0
    %795 = vmatprep.mubr.bf16.mxu0 %v539
    %796 = vmatmul.mubr.bf16.gmra.mrb[0].mxu0 %v292
    %v797 = vpop.f32.mrb[0].mxu0
    %v798 = vadd.f32 0.0, %v797
    %v799 = vpop.f32.mrb[0].mxu0
    %v800 = vpop.f32.mrb[0].mxu0
    %v801 = vadd.f32 0.0, %v800
    %v802 = vpop.f32.mrb[0].mxu0
    %803 = vmatprep.mubr.bf16.mxu0 %v540
    %804 = vmatmul.mubr.bf16.gmra.mrb[0].mxu0 %v293
    %v805 = vpop.f32.mrb[0].mxu0
    %v806 = vadd.f32 0.0, %v805
    %v807 = vpop.f32.mrb[0].mxu0
    %v808 = vpop.f32.mrb[0].mxu0
    %v809 = vadd.f32 0.0, %v808
    %v810 = vpop.f32.mrb[0].mxu0
    %811 = vmatprep.mubr.bf16.mxu0 %v541
    %812 = vmatmul.mubr.bf16.gmra.mrb[0].mxu0 %v294
    %v813 = vpop.f32.mrb[0].mxu0
    %v814 = vadd.f32 0.0, %v813
    %v815 = vpop.f32.mrb[0].mxu0
    %v816 = vpop.f32.mrb[0].mxu0
    %v817 = vadd.f32 0.0, %v816
    %v818 = vpop.f32.mrb[0].mxu0
    %819 = vmatprep.mubr.bf16.mxu0 %v542
    %820 = vmatmul.mubr.bf16.gmra.mrb[0].mxu0 %v295
    %v821 = vpop.f32.mrb[0].mxu0
    %v822 = vadd.f32 0.0, %v821
    %v823 = vpop.f32.mrb[0].mxu0
    %v824 = vpop.f32.mrb[0].mxu0
    %v825 = vadd.f32 0.0, %v824
    %v826 = vpop.f32.mrb[0].mxu0
    %827 = vmatprep.mubr.bf16.mxu0 %v543
    %828 = vmatmul.mubr.bf16.gmra.mrb[0].mxu0 %v296
    %v829 = vpop.f32.mrb[0].mxu0
    %v830 = vadd.f32 0.0, %v829
    %v831 = vpop.f32.mrb[0].mxu0
    %v832 = vpop.f32.mrb[0].mxu0
    %v833 = vadd.f32 0.0, %v832
    %v834 = vpop.f32.mrb[0].mxu0
    %835 = vmatprep.mubr.bf16.mxu0 %v544
    %836 = vmatmul.mubr.bf16.gmra.mrb[0].mxu0 %v297
    %v837 = vpop.f32.mrb[0].mxu0
    %v838 = vadd.f32 0.0, %v837
    %v839 = vpop.f32.mrb[0].mxu0
    %v840 = vpop.f32.mrb[0].mxu0
    %v841 = vadd.f32 0.0, %v840
    %v842 = vpop.f32.mrb[0].mxu0
    %843 = vmatprep.mubr.bf16.mxu0 %v545
    %844 = vmatmul.mubr.bf16.gmra.mrb[0].mxu0 %v298
    %v845 = vpop.f32.mrb[0].mxu0
    %v846 = vadd.f32 0.0, %v845
    %v847 = vpop.f32.mrb[0].mxu0
    %v848 = vpop.f32.mrb[0].mxu0
    %v849 = vadd.f32 0.0, %v848
    %v850 = vpop.f32.mrb[0].mxu0
    %851 = vmatprep.mubr.bf16.mxu0 %v546
    %852 = vmatmul.mubr.bf16.gmra.mrb[0].mxu0 %v299
    %v853 = vpop.f32.mrb[0].mxu0
    %v854 = vadd.f32 0.0, %v853
    %v855 = vpop.f32.mrb[0].mxu0
    %v856 = vpop.f32.mrb[0].mxu0
    %v857 = vadd.f32 0.0, %v856
    %v858 = vpop.f32.mrb[0].mxu0
    %859 = vdwg.mxu0
    %860 = vst [vmem:[#allocation2] sm:$0xff] %v710
    %861 = vst [vmem:[#allocation2 + $0x8] sm:$0xff] %v713
    %862 = vst [vmem:[#allocation2 + $0x10] sm:$0xff] %v718
    %863 = vst [vmem:[#allocation2 + $0x18] sm:$0xff] %v721
    %864 = vst [vmem:[#allocation2 + $0x20] sm:$0xff] %v726
    %865 = vst [vmem:[#allocation2 + $0x28] sm:$0xff] %v729
    %866 = vst [vmem:[#allocation2 + $0x30] sm:$0xff] %v734
    %867 = vst [vmem:[#allocation2 + $0x38] sm:$0xff] %v737
    %868 = vst [vmem:[#allocation2 + $0x40] sm:$0xff] %v742
    %869 = vst [vmem:[#allocation2 + $0x48] sm:$0xff] %v745
    %870 = vst [vmem:[#allocation2 + $0x50] sm:$0xff] %v750
    %871 = vst [vmem:[#allocation2 + $0x58] sm:$0xff] %v753
    %872 = vst [vmem:[#allocation2 + $0x60] sm:$0xff] %v758
    %873 = vst [vmem:[#allocation2 + $0x68] sm:$0xff] %v761
    %874 = vst [vmem:[#allocation2 + $0x70] sm:$0xff] %v766
    %875 = vst [vmem:[#allocation2 + $0x78] sm:$0xff] %v769
    %876 = vst [vmem:[#allocation2 + $0x80] sm:$0xff] %v774
    %877 = vst [vmem:[#allocation2 + $0x88] sm:$0xff] %v777
    %878 = vst [vmem:[#allocation2 + $0x90] sm:$0xff] %v782
    %879 = vst [vmem:[#allocation2 + $0x98] sm:$0xff] %v785
    %880 = vst [vmem:[#allocation2 + $0xa0] sm:$0xff] %v790
    %881 = vst [vmem:[#allocation2 + $0xa8] sm:$0xff] %v793
    %882 = vst [vmem:[#allocation2 + $0xb0] sm:$0xff] %v798
    %883 = vst [vmem:[#allocation2 + $0xb8] sm:$0xff] %v801
    %884 = vst [vmem:[#allocation2 + $0xc0] sm:$0xff] %v806
    %885 = vst [vmem:[#allocation2 + $0xc8] sm:$0xff] %v809
    %886 = vst [vmem:[#allocation2 + $0xd0] sm:$0xff] %v814
    %887 = vst [vmem:[#allocation2 + $0xd8] sm:$0xff] %v817
    %888 = vst [vmem:[#allocation2 + $0xe0] sm:$0xff] %v822
    %889 = vst [vmem:[#allocation2 + $0xe8] sm:$0xff] %v825
    %890 = vst [vmem:[#allocation2 + $0xf0] sm:$0xff] %v830
    %891 = vst [vmem:[#allocation2 + $0xf8] sm:$0xff] %v833
    %892 = vst [vmem:[#allocation2 + $0x100] sm:$0xff] %v838
    %893 = vst [vmem:[#allocation2 + $0x108] sm:$0xff] %v841
    %894 = vst [vmem:[#allocation2 + $0x110] sm:$0xff] %v846
    %895 = vst [vmem:[#allocation2 + $0x118] sm:$0xff] %v849
    %896 = vst [vmem:[#allocation2 + $0x120] sm:$0xff] %v854
    %897 = vst [vmem:[#allocation2 + $0x128] sm:$0xff] %v857
    // Predicated region
    $region10: #{tpu_custom_call.1} parent=1 // pred_check
      _
    $region11: #{tpu_custom_call.1} parent=1 // pred_check_branch
      %899 = sbr.rel (0) target = $region13
    $region12: #{tpu_custom_call.1} parent=1 // pred_region
      %s901 = ssub.s32 4864, 4864
      %902 = vsyncadd [#allocation3], %s901
      %s903 = sshll.u32 [#allocation2], 4
      %s904 = int_to_ptr.vmem [resolvable:$true] %s903
      %909 = dma.vmem_to_hbm [thread:$0]  %s904, 4864, %s2, [#allocation3], 128, 128, 8
    $region13: #{tpu_custom_call.1} parent=1 // pred_fallthru
      _
    // Predicated region
    $region14: #{tpu_custom_call.1} parent=1 // pred_check
      _
    $region15: #{tpu_custom_call.1} parent=1 // pred_check_branch
      %911 = sbr.rel (0) target = $region17
    $region16: #{tpu_custom_call.1} parent=1 // pred_region
      %912 = dma.done [#allocation3], 4864
    $region17: #{tpu_custom_call.1} parent=1 // pred_fallthru
      _
    %913 = vsyncpa [#allocation3], 1

</llo_original>
